<compile_context>
chip_gen: v7x
topology: tpu7x:2x2x1
jax: 0.10.0
libtpu: 0.0.40
codegen_flags: <defaults>
</compile_context>

<pallas_src>
import math

import jax
import jax.numpy as jnp
from jax.experimental import pallas as pl
from jax.experimental.pallas import tpu as pltpu


# ----------------------- stand-in user transforms (glue) ----------------------

_A = jnp.array([[111.3, 0.0, 0.0],
                [0.0, 96.5, 0.0],
                [0.0, 0.0, 1.0]], dtype=jnp.float32)
_POS_OFFSET = jnp.array([3330.0, 2880.0, 0.0], dtype=jnp.float32)
_POS_SCALE = 250.0
_VEL_SCALE = 1000.0
TIME_SCALE = 100.0          # inorm_time(x) = TIME_SCALE * x
CONVERSION_FACTOR = 2.0


def ftrns1(x):
    return x @ _A.T


def norm_pos(x):
    return (x - _POS_OFFSET) / _POS_SCALE


def norm_vel(v):
    return v / _VEL_SCALE


def inorm_time(t):
    return t * TIME_SCALE


def _round_up(x, m):
    return ((x + m - 1) // m) * m


# --------------------------------- kernel -------------------------------------

def ttpn_kernel(tscale_ref,     # SMEM (1,) f32: inorm_time scale
                x_ref,          # VMEM (TM, n_ph+9) f32: [base | dx dy dz | sta | src]
                alpha_ref,      # VMEM (3, 2*hp) f32: PReLU alphas (branch1 | branch2)
                w1_ref, b1_ref,  # (n_ph+9, 2*hp) bf16 / (1, 2*hp) f32
                w2_ref, b2_ref,  # (2*hp, 2*hp)  bf16 / (1, 2*hp) f32 (block-diag)
                w3_ref, b3_ref,  # (2*hp, 2*hp)  bf16 / (1, 2*hp) f32 (block-diag)
                w4_ref, b4_ref,  # (2*hp, n_ph)  bf16 / (1, n_ph) f32 (stacked)
                out_ref):       # VMEM (TM, n_ph) f32
    f32 = jnp.float32
    bf16 = jnp.bfloat16
    n_ph = out_ref.shape[-1]

    x = x_ref[...]                       # (TM, n_ph+9) f32
    base = x[:, :n_ph]                   # (TM, n_ph)   exact f32 base value
    al = alpha_ref[...]                  # (3, 2*hp)

    def prelu(v, a_row):
        # elementwise math kept in f32 (v5e has no bf16 VALU path)
        return jnp.where(v >= 0.0, v, a_row * v)

    def mm(v, w_ref):
        # bf16 MXU operands, f32 accumulation
        return jnp.dot(v.astype(bf16), w_ref[...], preferred_element_type=f32)

    # fused two-branch MLP over 2*hp lanes
    h1 = prelu(mm(x, w1_ref) + b1_ref[...], al[0:1, :])
    h2 = prelu(mm(h1, w2_ref) + b2_ref[...], al[1:2, :]) + h1
    h3 = prelu(mm(h2, w3_ref) + b3_ref[...], al[2:3, :]) + h2
    pred = mm(h3, w4_ref) + b4_ref[...]                  # (TM, n_ph) = branch1 + branch2

    out_ref[...] = jnp.maximum(tscale_ref[0] * (base + pred), 0.0)


# ------------------------------ forward wrapper --------------------------------

def traveltimes_pn_forward(params, sta, src, *, block_rows=1024):
    f32 = jnp.float32
    bf16 = jnp.bfloat16
    n_src, n_sta = src.shape[0], sta.shape[0]
    n_hidden = params["w1_2"].shape[0]
    n_ph = params["w1_4"].shape[1]
    hp = _round_up(n_hidden, 128)            # lane-dense hidden width per branch
    H2 = 2 * hp                              # fused (branch1 | branch2) width
    K = 9 + n_ph                             # shared first-layer input columns
    assert block_rows % 8 == 0

    # ---------------- fused / padded weights (exact-zero padding) ----------------
    w1_1 = params["w1_1"].astype(f32)
    w2_1 = params["w2_1"].astype(f32)

    W1 = jnp.zeros((K, H2), f32)
    # branch 1 columns [:hp]  — module input order (dx, dy, dz, base)
    W1 = W1.at[n_ph:n_ph + 3, 0:n_hidden].set(w1_1[0:3])
    W1 = W1.at[0:n_ph, 0:n_hidden].set(w1_1[3:3 + n_ph])
    # branch 2 columns [hp:]  — module input order (sta, src, base)
    W1 = W1.at[n_ph + 3:n_ph + 9, hp:hp + n_hidden].set(w2_1[0:6])
    W1 = W1.at[0:n_ph, hp:hp + n_hidden].set(w2_1[6:6 + n_ph])

    def pad_b(b):
        b = b.astype(f32)
        return jnp.pad(b, (0, hp - b.shape[0]))

    B1 = jnp.concatenate([pad_b(params["b1_1"]), pad_b(params["b2_1"])])[None, :]

    def block_diag(wa, wb):
        w = jnp.zeros((H2, H2), f32)
        w = w.at[0:n_hidden, 0:n_hidden].set(wa.astype(f32))
        w = w.at[hp:hp + n_hidden, hp:hp + n_hidden].set(wb.astype(f32))
        return w

    W2 = block_diag(params["w1_2"], params["w2_2"])
    B2 = jnp.concatenate([pad_b(params["b1_2"]), pad_b(params["b2_2"])])[None, :]
    W3 = block_diag(params["w1_3"], params["w2_3"])
    B3 = jnp.concatenate([pad_b(params["b1_3"]), pad_b(params["b2_3"])])[None, :]

    W4 = jnp.zeros((H2, n_ph), f32)
    W4 = W4.at[0:n_hidden, :].set(params["w1_4"].astype(f32))
    W4 = W4.at[hp:hp + n_hidden, :].set(params["w2_4"].astype(f32))
    B4 = (params["b1_4"].astype(f32) + params["b2_4"].astype(f32))[None, :]

    def alpha_row(a1, a2):
        return jnp.concatenate([jnp.full((hp,), a1, f32),
                                jnp.full((hp,), a2, f32)])[None, :]

    alphas = jnp.concatenate(
        [alpha_row(params["a1_1"], params["a2_1"]),
         alpha_row(params["a1_2"], params["a2_2"]),
         alpha_row(params["a1_3"], params["a2_3"])], axis=0)          # (3, H2)

    W1 = W1.astype(bf16)
    W2 = W2.astype(bf16)
    W3 = W3.astype(bf16)
    W4 = W4.astype(bf16)

    # --------- glue: projections, pair layout (src-major), first-layer input -----
    sta_proj = norm_pos(ftrns1(sta.astype(f32)))                      # (n_sta, 3)
    src_proj = norm_pos(ftrns1(src.astype(f32)))                      # (n_src, 3)
    src_rep = jnp.repeat(src_proj, n_sta, axis=0)                     # (P, 3)
    sta_rep = jnp.tile(sta_proj, (n_src, 1))                          # (P, 3)
    d = sta_rep - src_rep
    dist = jnp.sqrt(jnp.sum(d * d, axis=1, keepdims=True))            # (P, 1)
    v_norm = norm_vel(params["v_mean"].astype(f32))                   # (n_ph,)
    base = jnp.asarray(CONVERSION_FACTOR, f32) * dist / v_norm[None, :]   # (P, n_ph)
    coords = jnp.concatenate([base, d, sta_rep, src_rep], axis=1)     # (P, K)

    # --------- tile selection: big tiles, but >= 2 tiles for v7x's two cores -----
    p = n_src * n_sta
    tm = min(block_rows, max(8, _round_up(-(-p // 2), 8)))
    p_pad = _round_up(p, tm)
    coords = jnp.pad(coords, ((0, p_pad - p), (0, 0)))
    num_tiles = p_pad // tm

    tscale = jnp.asarray([TIME_SCALE], f32)                           # SMEM scalar

    coords_spec = pl.BlockSpec((tm, K), lambda i: (i, 0))
    out_spec = pl.BlockSpec((tm, n_ph), lambda i: (i, 0))
    smem_spec = pl.BlockSpec(memory_space=pltpu.MemorySpace.SMEM)

    consts = [alphas, W1, B1, W2, B2, W3, B3, W4, B4]
    const_specs = [pl.BlockSpec(c.shape, lambda i: (0, 0)) for c in consts]

    weight_bytes = sum(int(c.size) * int(c.dtype.itemsize) for c in consts)
    cost = pl.CostEstimate(
        flops=int(p_pad) * 2 * (K * H2 + 2 * H2 * H2 + H2 * n_ph),
        transcendentals=0,
        bytes_accessed=int(p_pad) * 4 * (K + n_ph) + weight_bytes,
    )

    out = pl.pallas_call(
        ttpn_kernel,
        out_shape=jax.ShapeDtypeStruct((p_pad, n_ph), f32),
        grid_spec=pltpu.PrefetchScalarGridSpec(
            num_scalar_prefetch=0,
            grid=(num_tiles,),
            in_specs=[smem_spec, coords_spec] + const_specs,
            out_specs=out_spec,
        ),
        compiler_params=pltpu.CompilerParams(
            dimension_semantics=("parallel",),
            vmem_limit_bytes=48 * 1024 * 1024,
        ),
        cost_estimate=cost,
    )(tscale, coords, *consts)

    return out[:p].reshape(n_src, n_sta, n_ph)


# ----------------------------- reference (plain JAX) ---------------------------

def traveltimes_pn_reference(params, sta, src, *, matmul_dtype=jnp.float32):
    """Plain-JAX forward mirroring the module.  matmul_dtype=bf16 mirrors the
    kernel's MXU precision exactly (f32 accumulation)."""
    f32 = jnp.float32
    n_src, n_sta = src.shape[0], sta.shape[0]
    n_ph = params["w1_4"].shape[1]

    sta_proj = norm_pos(ftrns1(sta.astype(f32)))
    src_proj = norm_pos(ftrns1(src.astype(f32)))
    src_rep = jnp.repeat(src_proj, n_sta, axis=0)
    sta_rep = jnp.tile(sta_proj, (n_src, 1))
    d = sta_rep - src_rep
    dist = jnp.sqrt(jnp.sum(d * d, axis=1, keepdims=True))
    v_norm = norm_vel(params["v_mean"].astype(f32))
    base = jnp.asarray(CONVERSION_FACTOR, f32) * dist / v_norm[None, :]

    def dot(x, w):
        return jnp.dot(x.astype(matmul_dtype), w.astype(matmul_dtype),
                       preferred_element_type=f32)

    def prelu(x, a):
        return jnp.where(x >= 0, x, a * x)

    def block(x, pfx):
        w = lambda i: params[f"w{pfx}_{i}"].astype(f32)
        b = lambda i: params[f"b{pfx}_{i}"].astype(f32)
        a = lambda i: params[f"a{pfx}_{i}"]
        x1 = prelu(dot(x, w(1)) + b(1), a(1))
        x2 = prelu(dot(x1, w(2)) + b(2), a(2)) + x1
        x3 = prelu(dot(x2, w(3)) + b(3), a(3)) + x2
        return dot(x3, w(4)) + b(4)

    pred = (block(jnp.concatenate([d, base], axis=1), 1)
            + block(jnp.concatenate([sta_rep, src_rep, base], axis=1), 2))
    out = jnp.maximum(inorm_time(base + pred), 0.0)
    return out.reshape(n_src, n_sta, n_ph)


# ----------------------------------- main --------------------------------------

if __name__ == "__main__":
    key = jax.random.PRNGKey(0)
    keys = jax.random.split(key, 12)

    n_src, n_sta = 20, 13
    n_hidden, n_phases = 100, 2

    def init_linear(k, fan_in, fan_out):
        kw, kb = jax.random.split(k)
        bound = 1.0 / math.sqrt(fan_in)
        w = jax.random.uniform(kw, (fan_in, fan_out), jnp.float32, -bound, bound)
        b = jax.random.uniform(kb, (fan_out,), jnp.float32, -bound, bound)
        return w, b

    params = {}
    params["w1_1"], params["b1_1"] = init_linear(keys[0], 3 + n_phases, n_hidden)
    params["w1_2"], params["b1_2"] = init_linear(keys[1], n_hidden, n_hidden)
    params["w1_3"], params["b1_3"] = init_linear(keys[2], n_hidden, n_hidden)
    params["w1_4"], params["b1_4"] = init_linear(keys[3], n_hidden, n_phases)
    params["w2_1"], params["b2_1"] = init_linear(keys[4], 6 + n_phases, n_hidden)
    params["w2_2"], params["b2_2"] = init_linear(keys[5], n_hidden, n_hidden)
    params["w2_3"], params["b2_3"] = init_linear(keys[6], n_hidden, n_hidden)
    params["w2_4"], params["b2_4"] = init_linear(keys[7], n_hidden, n_phases)
    params["a1_1"] = jnp.asarray(0.25, jnp.float32)
    params["a1_2"] = jnp.asarray(0.20, jnp.float32)
    params["a1_3"] = jnp.asarray(0.15, jnp.float32)
    params["a2_1"] = jnp.asarray(0.30, jnp.float32)
    params["a2_2"] = jnp.asarray(0.10, jnp.float32)
    params["a2_3"] = jnp.asarray(0.05, jnp.float32)
    params["v_mean"] = jnp.array([6500.0, 3400.0], jnp.float32)

    sta = jnp.concatenate(
        [jax.random.uniform(keys[8], (n_sta, 2), jnp.float32, 30.0, 32.0),
         jax.random.uniform(keys[9], (n_sta, 1), jnp.float32, 0.0, 3.0)], axis=1)
    src = jnp.concatenate(
        [jax.random.uniform(keys[10], (n_src, 2), jnp.float32, 30.0, 32.0),
         jax.random.uniform(keys[11], (n_src, 1), jnp.float32, 0.0, 30.0)], axis=1)

    out = traveltimes_pn_forward(params, sta, src, block_rows=1024)
    out = jax.block_until_ready(out)
    assert out.shape == (n_src, n_sta, n_phases)

    # Tight check against a reference that mirrors the kernel's bf16 MXU precision.
    ref_bf16 = traveltimes_pn_reference(params, sta, src, matmul_dtype=jnp.bfloat16)
    assert jnp.allclose(out, ref_bf16, rtol=1e-3, atol=1e-3), "mismatch vs bf16 reference"

    # Loose sanity check against the full-f32 module semantics (bf16 rounding slack).
    ref_f32 = traveltimes_pn_reference(params, sta, src, matmul_dtype=jnp.float32)
    assert jnp.allclose(out, ref_f32, rtol=5e-2, atol=2.0), "mismatch vs f32 reference"

    print("KERNEL_OK")
</pallas_src>

<mosaic_0001>
module attributes {stable_mosaic.version = 11 : i64} {
  func.func @ttpn_kernel(%arg0: i32, %arg1: memref<1xf32, #tpu.memory_space<smem>>, %arg2: memref<136x11xf32, #tpu.memory_space<vmem>>, %arg3: memref<3x256xf32, #tpu.memory_space<vmem>>, %arg4: memref<11x256xbf16, #tpu.memory_space<vmem>>, %arg5: memref<1x256xf32, #tpu.memory_space<vmem>>, %arg6: memref<256x256xbf16, #tpu.memory_space<vmem>>, %arg7: memref<1x256xf32, #tpu.memory_space<vmem>>, %arg8: memref<256x256xbf16, #tpu.memory_space<vmem>>, %arg9: memref<1x256xf32, #tpu.memory_space<vmem>>, %arg10: memref<256x2xbf16, #tpu.memory_space<vmem>>, %arg11: memref<1x2xf32, #tpu.memory_space<vmem>>, %arg12: memref<136x2xf32, #tpu.memory_space<vmem>>) attributes {dimension_semantics = [#tpu.dimension_semantics<parallel>], iteration_bounds = array<i64: 2>, scalar_prefetch = 0 : i64, scratch_operands = 0 : i64, tpu.core_type = #tpu.core_type<tc>, window_params = [{transform_indices = @transform_0, window_bounds = array<i64: 1>}, {transform_indices = @transform_1, window_bounds = array<i64: 136, 11>}, {pipeline_mode = #tpu.pipeline_mode<synchronous>, transform_indices = @transform_2, window_bounds = array<i64: 3, 256>}, {pipeline_mode = #tpu.pipeline_mode<synchronous>, transform_indices = @transform_3, window_bounds = array<i64: 11, 256>}, {pipeline_mode = #tpu.pipeline_mode<synchronous>, transform_indices = @transform_4, window_bounds = array<i64: 1, 256>}, {pipeline_mode = #tpu.pipeline_mode<synchronous>, transform_indices = @transform_5, window_bounds = array<i64: 256, 256>}, {pipeline_mode = #tpu.pipeline_mode<synchronous>, transform_indices = @transform_6, window_bounds = array<i64: 1, 256>}, {pipeline_mode = #tpu.pipeline_mode<synchronous>, transform_indices = @transform_7, window_bounds = array<i64: 256, 256>}, {pipeline_mode = #tpu.pipeline_mode<synchronous>, transform_indices = @transform_8, window_bounds = array<i64: 1, 256>}, {pipeline_mode = #tpu.pipeline_mode<synchronous>, transform_indices = @transform_9, window_bounds = array<i64: 256, 2>}, {pipeline_mode = #tpu.pipeline_mode<synchronous>, transform_indices = @transform_10, window_bounds = array<i64: 1, 2>}, {transform_indices = @transform_11, window_bounds = array<i64: 136, 2>}]} {
    %c0 = arith.constant 0 : index
    %c0_0 = arith.constant 0 : index
    %0 = vector.load %arg2[%c0, %c0_0] : memref<136x11xf32, #tpu.memory_space<vmem>>, vector<136x11xf32>
    %1 = vector.extract_strided_slice %0 {offsets = [0, 0], sizes = [136, 2], strides = [1, 1]} : vector<136x11xf32> to vector<136x2xf32>
    %c0_1 = arith.constant 0 : index
    %c0_2 = arith.constant 0 : index
    %2 = vector.load %arg3[%c0_1, %c0_2] : memref<3x256xf32, #tpu.memory_space<vmem>>, vector<3x256xf32>
    %3 = arith.truncf %0 : vector<136x11xf32> to vector<136x11xbf16>
    %c0_3 = arith.constant 0 : index
    %c0_4 = arith.constant 0 : index
    %4 = vector.load %arg4[%c0_3, %c0_4] : memref<11x256xbf16, #tpu.memory_space<vmem>>, vector<11x256xbf16>
    %cst = arith.constant dense<0.000000e+00> : vector<136x256xf32>
    %5 = tpu.matmul %3, %4, %cst {dimension_numbers = #tpu.dot_dimension_numbers<[1], [0], [0], [1], [0, 0, 1, 1], [], []>} : vector<136x11xbf16>, vector<11x256xbf16>, vector<136x256xf32> -> vector<136x256xf32>
    %c0_5 = arith.constant 0 : index
    %c0_6 = arith.constant 0 : index
    %6 = vector.load %arg5[%c0_5, %c0_6] : memref<1x256xf32, #tpu.memory_space<vmem>>, vector<1x256xf32>
    %7 = vector.broadcast %6 : vector<1x256xf32> to vector<136x256xf32>
    %8 = arith.addf %5, %7 : vector<136x256xf32>
    %9 = vector.extract_strided_slice %2 {offsets = [0, 0], sizes = [1, 256], strides = [1, 1]} : vector<3x256xf32> to vector<1x256xf32>
    %cst_7 = arith.constant 0.000000e+00 : f32
    %10 = vector.broadcast %cst_7 : f32 to vector<136x256xf32>
    %11 = arith.cmpf oge, %8, %10 : vector<136x256xf32>
    %12 = vector.broadcast %9 : vector<1x256xf32> to vector<136x256xf32>
    %13 = arith.mulf %12, %8 : vector<136x256xf32>
    %14 = arith.select %11, %8, %13 : vector<136x256xi1>, vector<136x256xf32>
    %15 = arith.truncf %14 : vector<136x256xf32> to vector<136x256xbf16>
    %c0_8 = arith.constant 0 : index
    %c0_9 = arith.constant 0 : index
    %16 = vector.load %arg6[%c0_8, %c0_9] : memref<256x256xbf16, #tpu.memory_space<vmem>>, vector<256x256xbf16>
    %cst_10 = arith.constant dense<0.000000e+00> : vector<136x256xf32>
    %17 = tpu.matmul %15, %16, %cst_10 {dimension_numbers = #tpu.dot_dimension_numbers<[1], [0], [0], [1], [0, 0, 1, 1], [], []>} : vector<136x256xbf16>, vector<256x256xbf16>, vector<136x256xf32> -> vector<136x256xf32>
    %c0_11 = arith.constant 0 : index
    %c0_12 = arith.constant 0 : index
    %18 = vector.load %arg7[%c0_11, %c0_12] : memref<1x256xf32, #tpu.memory_space<vmem>>, vector<1x256xf32>
    %19 = vector.broadcast %18 : vector<1x256xf32> to vector<136x256xf32>
    %20 = arith.addf %17, %19 : vector<136x256xf32>
    %21 = vector.extract_strided_slice %2 {offsets = [1, 0], sizes = [1, 256], strides = [1, 1]} : vector<3x256xf32> to vector<1x256xf32>
    %cst_13 = arith.constant 0.000000e+00 : f32
    %22 = vector.broadcast %cst_13 : f32 to vector<136x256xf32>
    %23 = arith.cmpf oge, %20, %22 : vector<136x256xf32>
    %24 = vector.broadcast %21 : vector<1x256xf32> to vector<136x256xf32>
    %25 = arith.mulf %24, %20 : vector<136x256xf32>
    %26 = arith.select %23, %20, %25 : vector<136x256xi1>, vector<136x256xf32>
    %27 = arith.addf %26, %14 : vector<136x256xf32>
    %28 = arith.truncf %27 : vector<136x256xf32> to vector<136x256xbf16>
    %c0_14 = arith.constant 0 : index
    %c0_15 = arith.constant 0 : index
    %29 = vector.load %arg8[%c0_14, %c0_15] : memref<256x256xbf16, #tpu.memory_space<vmem>>, vector<256x256xbf16>
    %cst_16 = arith.constant dense<0.000000e+00> : vector<136x256xf32>
    %30 = tpu.matmul %28, %29, %cst_16 {dimension_numbers = #tpu.dot_dimension_numbers<[1], [0], [0], [1], [0, 0, 1, 1], [], []>} : vector<136x256xbf16>, vector<256x256xbf16>, vector<136x256xf32> -> vector<136x256xf32>
    %c0_17 = arith.constant 0 : index
    %c0_18 = arith.constant 0 : index
    %31 = vector.load %arg9[%c0_17, %c0_18] : memref<1x256xf32, #tpu.memory_space<vmem>>, vector<1x256xf32>
    %32 = vector.broadcast %31 : vector<1x256xf32> to vector<136x256xf32>
    %33 = arith.addf %30, %32 : vector<136x256xf32>
    %34 = vector.extract_strided_slice %2 {offsets = [2, 0], sizes = [1, 256], strides = [1, 1]} : vector<3x256xf32> to vector<1x256xf32>
    %cst_19 = arith.constant 0.000000e+00 : f32
    %35 = vector.broadcast %cst_19 : f32 to vector<136x256xf32>
    %36 = arith.cmpf oge, %33, %35 : vector<136x256xf32>
    %37 = vector.broadcast %34 : vector<1x256xf32> to vector<136x256xf32>
    %38 = arith.mulf %37, %33 : vector<136x256xf32>
    %39 = arith.select %36, %33, %38 : vector<136x256xi1>, vector<136x256xf32>
    %40 = arith.addf %39, %27 : vector<136x256xf32>
    %41 = arith.truncf %40 : vector<136x256xf32> to vector<136x256xbf16>
    %c0_20 = arith.constant 0 : index
    %c0_21 = arith.constant 0 : index
    %42 = vector.load %arg10[%c0_20, %c0_21] : memref<256x2xbf16, #tpu.memory_space<vmem>>, vector<256x2xbf16>
    %cst_22 = arith.constant dense<0.000000e+00> : vector<136x2xf32>
    %43 = tpu.matmul %41, %42, %cst_22 {dimension_numbers = #tpu.dot_dimension_numbers<[1], [0], [0], [1], [0, 0, 1, 1], [], []>} : vector<136x256xbf16>, vector<256x2xbf16>, vector<136x2xf32> -> vector<136x2xf32>
    %c0_23 = arith.constant 0 : index
    %c0_24 = arith.constant 0 : index
    %44 = vector.load %arg11[%c0_23, %c0_24] : memref<1x2xf32, #tpu.memory_space<vmem>>, vector<1x2xf32>
    %45 = vector.broadcast %44 : vector<1x2xf32> to vector<136x2xf32>
    %46 = arith.addf %43, %45 : vector<136x2xf32>
    %c0_25 = arith.constant 0 : index
    %47 = memref.load %arg1[%c0_25] : memref<1xf32, #tpu.memory_space<smem>>
    %48 = arith.addf %1, %46 : vector<136x2xf32>
    %49 = vector.broadcast %47 : f32 to vector<136x2xf32>
    %50 = arith.mulf %49, %48 : vector<136x2xf32>
    %cst_26 = arith.constant 0.000000e+00 : f32
    %51 = vector.broadcast %cst_26 : f32 to vector<136x2xf32>
    %52 = arith.maximumf %50, %51 : vector<136x2xf32>
    %c0_27 = arith.constant 0 : index
    %c0_28 = arith.constant 0 : index
    %53 = vector.load %arg12[%c0_27, %c0_28] : memref<136x2xf32, #tpu.memory_space<vmem>>, vector<136x2xf32>
    tpu.vector_store %arg12[%c0_27, %c0_28], %52 {strides = array<i32>} : memref<136x2xf32, #tpu.memory_space<vmem>>, vector<136x2xf32>,
    return
  }
  func.func @transform_0(%arg0: i32) -> i32 {
    %c0_i32 = arith.constant 0 : i32
    %c0_i32_0 = arith.constant 0 : i32
    return %c0_i32 : i32
  }
  func.func @transform_1(%arg0: i32) -> (i32, i32) {
    %c0_i32 = arith.constant 0 : i32
    %c0_i32_0 = arith.constant 0 : i32
    return %arg0, %c0_i32 : i32, i32
  }
  func.func @transform_2(%arg0: i32) -> (i32, i32) {
    %c0_i32 = arith.constant 0 : i32
    %c0_i32_0 = arith.constant 0 : i32
    %c0_i32_1 = arith.constant 0 : i32
    return %c0_i32, %c0_i32_0 : i32, i32
  }
  func.func @transform_3(%arg0: i32) -> (i32, i32) {
    %c0_i32 = arith.constant 0 : i32
    %c0_i32_0 = arith.constant 0 : i32
    %c0_i32_1 = arith.constant 0 : i32
    return %c0_i32, %c0_i32_0 : i32, i32
  }
  func.func @transform_4(%arg0: i32) -> (i32, i32) {
    %c0_i32 = arith.constant 0 : i32
    %c0_i32_0 = arith.constant 0 : i32
    %c0_i32_1 = arith.constant 0 : i32
    return %c0_i32, %c0_i32_0 : i32, i32
  }
  func.func @transform_5(%arg0: i32) -> (i32, i32) {
    %c0_i32 = arith.constant 0 : i32
    %c0_i32_0 = arith.constant 0 : i32
    %c0_i32_1 = arith.constant 0 : i32
    return %c0_i32, %c0_i32_0 : i32, i32
  }
  func.func @transform_6(%arg0: i32) -> (i32, i32) {
    %c0_i32 = arith.constant 0 : i32
    %c0_i32_0 = arith.constant 0 : i32
    %c0_i32_1 = arith.constant 0 : i32
    return %c0_i32, %c0_i32_0 : i32, i32
  }
  func.func @transform_7(%arg0: i32) -> (i32, i32) {
    %c0_i32 = arith.constant 0 : i32
    %c0_i32_0 = arith.constant 0 : i32
    %c0_i32_1 = arith.constant 0 : i32
    return %c0_i32, %c0_i32_0 : i32, i32
  }
  func.func @transform_8(%arg0: i32) -> (i32, i32) {
    %c0_i32 = arith.constant 0 : i32
    %c0_i32_0 = arith.constant 0 : i32
    %c0_i32_1 = arith.constant 0 : i32
    return %c0_i32, %c0_i32_0 : i32, i32
  }
  func.func @transform_9(%arg0: i32) -> (i32, i32) {
    %c0_i32 = arith.constant 0 : i32
    %c0_i32_0 = arith.constant 0 : i32
    %c0_i32_1 = arith.constant 0 : i32
    return %c0_i32, %c0_i32_0 : i32, i32
  }
  func.func @transform_10(%arg0: i32) -> (i32, i32) {
    %c0_i32 = arith.constant 0 : i32
    %c0_i32_0 = arith.constant 0 : i32
    %c0_i32_1 = arith.constant 0 : i32
    return %c0_i32, %c0_i32_0 : i32, i32
  }
  func.func @transform_11(%arg0: i32) -> (i32, i32) {
    %c0_i32 = arith.constant 0 : i32
    %c0_i32_0 = arith.constant 0 : i32
    return %arg0, %c0_i32 : i32, i32
  }
}

</mosaic_0001>

<llo_original>
// kernel: tpu_custom_call.1
$region0: #{tpu_custom_call.1}
  #allocation0 [shape = 'u32[]', space=smem, size = 0x4, offset = 0x4, fixed_abs, tag = 'smem constant byte address 0x4 - core index']
  #allocation1 [shape = 'u32[144,128]{1,0:T(1,128)}', space=vmem, size = 0x12000, scoped, tag = 'internal scratch']
  #allocation2 [shape = 'f32[1]{0:T(128)S(6)}', space=smem, size = 0x200, scoped, tag = 'scoped memory for tpu_custom_call.1']
  %s0 = inlined_call_operand.<no memory space> [shape: f32[1], index: 0, kind: input, shape index: {}]
  %s1 = inlined_call_operand.vmem [shape: f32[272,11], index: 1, kind: input, shape index: {}]
  %s2 = inlined_call_operand.vmem [shape: f32[3,256], index: 2, kind: input, shape index: {}]
  %s3 = inlined_call_operand.vmem [shape: bf16[11,256], index: 3, kind: input, shape index: {}]
  %s4 = inlined_call_operand.vmem [shape: f32[1,256], index: 4, kind: input, shape index: {}]
  %s5 = inlined_call_operand.vmem [shape: bf16[256,256], index: 5, kind: input, shape index: {}]
  %s6 = inlined_call_operand.vmem [shape: f32[1,256], index: 6, kind: input, shape index: {}]
  %s7 = inlined_call_operand.hbm [shape: bf16[256,256], index: 7, kind: input, shape index: {}]
  %s8 = inlined_call_operand.vmem [shape: f32[1,256], index: 8, kind: input, shape index: {}]
  %s9 = inlined_call_operand.vmem [shape: bf16[256,2], index: 9, kind: input, shape index: {}]
  %s10 = inlined_call_operand.vmem [shape: f32[1,2], index: 10, kind: input, shape index: {}]
  %s11 = inlined_call_operand.vmem [shape: f32[272,2], index: 11, kind: output, shape index: {}]
  %s12 = sld [smem:[#allocation0]]
  $region81: #{tpu_custom_call.1} parent=0
    _
  %s14 = ssub.s32 1, %s12
  %s15 = scalar_select 0, %s14, %s12
  %16 = sst [smem:[#allocation2]] %s0
  $region1: #{tpu_custom_call.1} parent=0
    #allocation3 [shape = 'u8[131072]{0}', space=vmem, size = 0x20000, scoped, tag = 'input window, operand 7, single buffered']
    #allocation4 [shape = 's32[2]{0}', space=sflag, size = 0x8, scoped, tag = 'scoped memory for tpu_custom_call.1']
    %17 = vsyncpa [#allocation4], 0
    loop: start=0, step=1, limit=4
    $region2: #{tpu_custom_call.1} parent=1 // loop_pre_header
      _
    $region3: #{tpu_custom_call.1} parent=1 // loop_header
      %s19 = sphi 0, %s23
      %p20 = scmp.ge.s32.totalorder %s19, 4
      %s27 = sphi 0, %s27
      %s29 = sphi 0, %s27
      %s30 = sphi 0, %s29
      %s44 = sphi 0, %s30
      %s50 = sphi 0, %s52
      %s53 = sphi 0, %s50
      %s54 = sphi 0, %s53
      %s70 = sphi 0, %s54
      %s74 = sphi 0, %s74
      %s76 = sphi 0, %s74
      %s77 = sphi 0, %s76
      %s91 = sphi 0, %s77
      %s95 = sphi 0, %s95
      %s97 = sphi 0, %s95
      %s98 = sphi 0, %s97
      %s112 = sphi 0, %s98
      %s116 = sphi 0, %s116
      %s118 = sphi 0, %s116
      %s119 = sphi 0, %s118
      %s133 = sphi 0, %s119
      %s137 = sphi 0, %s137
      %s139 = sphi 0, %s137
      %s140 = sphi 0, %s139
      %s154 = sphi 0, %s140
      %s158 = sphi 0, %s158
      %s160 = sphi 0, %s158
      %s161 = sphi 0, %s160
      %s175 = sphi 0, %s161
      %s179 = sphi 0, %s179
      %s181 = sphi 0, %s179
      %s182 = sphi 0, %s181
      %s196 = sphi 0, %s182
      %s200 = sphi 0, %s200
      %s202 = sphi 0, %s200
      %s203 = sphi 0, %s202
      %s217 = sphi 0, %s203
      %s221 = sphi 0, %s221
      %s223 = sphi 0, %s221
      %s224 = sphi 0, %s223
      %s238 = sphi 0, %s224
      %s242 = sphi 0, %s242
      %s244 = sphi 0, %s242
      %s245 = sphi 0, %s244
      %s259 = sphi 0, %s245
      %s265 = sphi 0, %s267
      %s268 = sphi 0, %s265
      %s269 = sphi 0, %s268
      %s285 = sphi 0, %s269
    $region4: #{tpu_custom_call.1} parent=1 // loop_header_branch
      %22 = sbr.rel (%p20) target = $region8
    $region5: #{tpu_custom_call.1} parent=1 // loop_body
      %s24 = ssub.s32 %s19, 1
      %s25 = ssub.s32 %s19, 2
      %s26 = sadd.s32 %s19, 1
      %s28 = sadd.s32 %s27, 1
      %p31 = scmp.eq.s32.totalorder %s19, 1
      %p32 = scmp.ne.s32.totalorder %s27, %s29
      %p33 = scmp.eq.s32.totalorder %s19, 0
      %p34 = por %p32, %p33
      %p35 = scmp.ne.s32.totalorder %s27, %s29
      %p36 = scmp.eq.s32.totalorder %s24, 1
      %p37 = por %p35, %p36
      %p38 = scmp.ne.s32.totalorder %s29, %s30
      %p39 = scmp.eq.s32.totalorder %s24, 0
      %p40 = por %p38, %p39
      %p41 = scmp.ne.s32.totalorder %s29, %s30
      %p42 = scmp.eq.s32.totalorder %s25, 1
      %p43 = por %p41, %p42
      %p45 = scmp.ne.s32.totalorder %s30, %s44
      %p46 = scmp.eq.s32.totalorder %s25, 0
      %p47 = por %p45, %p46
      %s48 = ssub.s32 %s19, %s26
      %p49 = scmp.eq.s32.totalorder %s48, 0
      %s51 = sadd.s32 %s50, 1
      %s52 = scalar_select %p49, %s50, %s51
      %p55 = pneg %p49
      %p56 = scmp.eq.s32.totalorder %s19, 1
      %p57 = por %p55, %p56
      %p58 = scmp.ne.s32.totalorder %s50, %s53
      %p59 = scmp.eq.s32.totalorder %s19, 0
      %p60 = por %p58, %p59
      %p61 = scmp.ne.s32.totalorder %s50, %s53
      %p62 = scmp.eq.s32.totalorder %s24, 1
      %p63 = por %p61, %p62
      %p64 = scmp.ne.s32.totalorder %s53, %s54
      %p65 = scmp.eq.s32.totalorder %s24, 0
      %p66 = por %p64, %p65
      %p67 = scmp.ne.s32.totalorder %s53, %s54
      %p68 = scmp.eq.s32.totalorder %s25, 1
      %p69 = por %p67, %p68
      %p71 = scmp.ne.s32.totalorder %s54, %s70
      %p72 = scmp.eq.s32.totalorder %s25, 0
      %p73 = por %p71, %p72
      %s75 = sadd.s32 %s74, 1
      %p78 = scmp.eq.s32.totalorder %s19, 1
      %p79 = scmp.ne.s32.totalorder %s74, %s76
      %p80 = scmp.eq.s32.totalorder %s19, 0
      %p81 = por %p79, %p80
      %p82 = scmp.ne.s32.totalorder %s74, %s76
      %p83 = scmp.eq.s32.totalorder %s24, 1
      %p84 = por %p82, %p83
      %p85 = scmp.ne.s32.totalorder %s76, %s77
      %p86 = scmp.eq.s32.totalorder %s24, 0
      %p87 = por %p85, %p86
      %p88 = scmp.ne.s32.totalorder %s76, %s77
      %p89 = scmp.eq.s32.totalorder %s25, 1
      %p90 = por %p88, %p89
      %p92 = scmp.ne.s32.totalorder %s77, %s91
      %p93 = scmp.eq.s32.totalorder %s25, 0
      %p94 = por %p92, %p93
      %s96 = sadd.s32 %s95, 1
      %p99 = scmp.eq.s32.totalorder %s19, 1
      %p100 = scmp.ne.s32.totalorder %s95, %s97
      %p101 = scmp.eq.s32.totalorder %s19, 0
      %p102 = por %p100, %p101
      %p103 = scmp.ne.s32.totalorder %s95, %s97
      %p104 = scmp.eq.s32.totalorder %s24, 1
      %p105 = por %p103, %p104
      %p106 = scmp.ne.s32.totalorder %s97, %s98
      %p107 = scmp.eq.s32.totalorder %s24, 0
      %p108 = por %p106, %p107
      %p109 = scmp.ne.s32.totalorder %s97, %s98
      %p110 = scmp.eq.s32.totalorder %s25, 1
      %p111 = por %p109, %p110
      %p113 = scmp.ne.s32.totalorder %s98, %s112
      %p114 = scmp.eq.s32.totalorder %s25, 0
      %p115 = por %p113, %p114
      %s117 = sadd.s32 %s116, 1
      %p120 = scmp.eq.s32.totalorder %s19, 1
      %p121 = scmp.ne.s32.totalorder %s116, %s118
      %p122 = scmp.eq.s32.totalorder %s19, 0
      %p123 = por %p121, %p122
      %p124 = scmp.ne.s32.totalorder %s116, %s118
      %p125 = scmp.eq.s32.totalorder %s24, 1
      %p126 = por %p124, %p125
      %p127 = scmp.ne.s32.totalorder %s118, %s119
      %p128 = scmp.eq.s32.totalorder %s24, 0
      %p129 = por %p127, %p128
      %p130 = scmp.ne.s32.totalorder %s118, %s119
      %p131 = scmp.eq.s32.totalorder %s25, 1
      %p132 = por %p130, %p131
      %p134 = scmp.ne.s32.totalorder %s119, %s133
      %p135 = scmp.eq.s32.totalorder %s25, 0
      %p136 = por %p134, %p135
      %s138 = sadd.s32 %s137, 1
      %p141 = scmp.eq.s32.totalorder %s19, 1
      %p142 = scmp.ne.s32.totalorder %s137, %s139
      %p143 = scmp.eq.s32.totalorder %s19, 0
      %p144 = por %p142, %p143
      %p145 = scmp.ne.s32.totalorder %s137, %s139
      %p146 = scmp.eq.s32.totalorder %s24, 1
      %p147 = por %p145, %p146
      %p148 = scmp.ne.s32.totalorder %s139, %s140
      %p149 = scmp.eq.s32.totalorder %s24, 0
      %p150 = por %p148, %p149
      %p151 = scmp.ne.s32.totalorder %s139, %s140
      %p152 = scmp.eq.s32.totalorder %s25, 1
      %p153 = por %p151, %p152
      %p155 = scmp.ne.s32.totalorder %s140, %s154
      %p156 = scmp.eq.s32.totalorder %s25, 0
      %p157 = por %p155, %p156
      %s159 = sadd.s32 %s158, 1
      %p162 = scmp.eq.s32.totalorder %s19, 1
      %p163 = scmp.ne.s32.totalorder %s158, %s160
      %p164 = scmp.eq.s32.totalorder %s19, 0
      %p165 = por %p163, %p164
      %p166 = scmp.ne.s32.totalorder %s158, %s160
      %p167 = scmp.eq.s32.totalorder %s24, 1
      %p168 = por %p166, %p167
      %p169 = scmp.ne.s32.totalorder %s160, %s161
      %p170 = scmp.eq.s32.totalorder %s24, 0
      %p171 = por %p169, %p170
      %p172 = scmp.ne.s32.totalorder %s160, %s161
      %p173 = scmp.eq.s32.totalorder %s25, 1
      %p174 = por %p172, %p173
      %p176 = scmp.ne.s32.totalorder %s161, %s175
      %p177 = scmp.eq.s32.totalorder %s25, 0
      %p178 = por %p176, %p177
      %s180 = sadd.s32 %s179, 1
      %p183 = scmp.eq.s32.totalorder %s19, 1
      %p184 = scmp.ne.s32.totalorder %s179, %s181
      %p185 = scmp.eq.s32.totalorder %s19, 0
      %p186 = por %p184, %p185
      %p187 = scmp.ne.s32.totalorder %s179, %s181
      %p188 = scmp.eq.s32.totalorder %s24, 1
      %p189 = por %p187, %p188
      %p190 = scmp.ne.s32.totalorder %s181, %s182
      %p191 = scmp.eq.s32.totalorder %s24, 0
      %p192 = por %p190, %p191
      %p193 = scmp.ne.s32.totalorder %s181, %s182
      %p194 = scmp.eq.s32.totalorder %s25, 1
      %p195 = por %p193, %p194
      %p197 = scmp.ne.s32.totalorder %s182, %s196
      %p198 = scmp.eq.s32.totalorder %s25, 0
      %p199 = por %p197, %p198
      %s201 = sadd.s32 %s200, 1
      %p204 = scmp.eq.s32.totalorder %s19, 1
      %p205 = scmp.ne.s32.totalorder %s200, %s202
      %p206 = scmp.eq.s32.totalorder %s19, 0
      %p207 = por %p205, %p206
      %p208 = scmp.ne.s32.totalorder %s200, %s202
      %p209 = scmp.eq.s32.totalorder %s24, 1
      %p210 = por %p208, %p209
      %p211 = scmp.ne.s32.totalorder %s202, %s203
      %p212 = scmp.eq.s32.totalorder %s24, 0
      %p213 = por %p211, %p212
      %p214 = scmp.ne.s32.totalorder %s202, %s203
      %p215 = scmp.eq.s32.totalorder %s25, 1
      %p216 = por %p214, %p215
      %p218 = scmp.ne.s32.totalorder %s203, %s217
      %p219 = scmp.eq.s32.totalorder %s25, 0
      %p220 = por %p218, %p219
      %s222 = sadd.s32 %s221, 1
      %p225 = scmp.eq.s32.totalorder %s19, 1
      %p226 = scmp.ne.s32.totalorder %s221, %s223
      %p227 = scmp.eq.s32.totalorder %s19, 0
      %p228 = por %p226, %p227
      %p229 = scmp.ne.s32.totalorder %s221, %s223
      %p230 = scmp.eq.s32.totalorder %s24, 1
      %p231 = por %p229, %p230
      %p232 = scmp.ne.s32.totalorder %s223, %s224
      %p233 = scmp.eq.s32.totalorder %s24, 0
      %p234 = por %p232, %p233
      %p235 = scmp.ne.s32.totalorder %s223, %s224
      %p236 = scmp.eq.s32.totalorder %s25, 1
      %p237 = por %p235, %p236
      %p239 = scmp.ne.s32.totalorder %s224, %s238
      %p240 = scmp.eq.s32.totalorder %s25, 0
      %p241 = por %p239, %p240
      %s243 = sadd.s32 %s242, 1
      %p246 = scmp.eq.s32.totalorder %s19, 1
      %p247 = scmp.ne.s32.totalorder %s242, %s244
      %p248 = scmp.eq.s32.totalorder %s19, 0
      %p249 = por %p247, %p248
      %p250 = scmp.ne.s32.totalorder %s242, %s244
      %p251 = scmp.eq.s32.totalorder %s24, 1
      %p252 = por %p250, %p251
      %p253 = scmp.ne.s32.totalorder %s244, %s245
      %p254 = scmp.eq.s32.totalorder %s24, 0
      %p255 = por %p253, %p254
      %p256 = scmp.ne.s32.totalorder %s244, %s245
      %p257 = scmp.eq.s32.totalorder %s25, 1
      %p258 = por %p256, %p257
      %p260 = scmp.ne.s32.totalorder %s245, %s259
      %p261 = scmp.eq.s32.totalorder %s25, 0
      %p262 = por %p260, %p261
      %s263 = ssub.s32 %s19, %s26
      %p264 = scmp.eq.s32.totalorder %s263, 0
      %s266 = sadd.s32 %s265, 1
      %s267 = scalar_select %p264, %s265, %s266
      %p270 = pneg %p264
      %p271 = scmp.eq.s32.totalorder %s19, 1
      %p272 = por %p270, %p271
      %p273 = scmp.ne.s32.totalorder %s265, %s268
      %p274 = scmp.eq.s32.totalorder %s19, 0
      %p275 = por %p273, %p274
      %p276 = scmp.ne.s32.totalorder %s265, %s268
      %p277 = scmp.eq.s32.totalorder %s24, 1
      %p278 = por %p276, %p277
      %p279 = scmp.ne.s32.totalorder %s268, %s269
      %p280 = scmp.eq.s32.totalorder %s24, 0
      %p281 = por %p279, %p280
      %p282 = scmp.ne.s32.totalorder %s268, %s269
      %p283 = scmp.eq.s32.totalorder %s25, 1
      %p284 = por %p282, %p283
      %p286 = scmp.ne.s32.totalorder %s269, %s285
      %p287 = scmp.eq.s32.totalorder %s25, 0
      %p288 = por %p286, %p287
      %p289 = scmp.le.s32.totalorder 1, %s19
      %p290 = scmp.lt.s32.totalorder %s19, 3
      %p291 = pnand %p289, %p290
      %p292 = pneg %p291
      // Predicated region
      $region9: #{tpu_custom_call.1} parent=5 // pred_check
        _
      $region10: #{tpu_custom_call.1} parent=5 // pred_check_branch
        %294 = sbr.rel (%p291) target = $region12
      $region11: #{tpu_custom_call.1} parent=5 // pred_region
        %s295 = ssub.s32 %s19, 1
        // Predicated region
        $region13: #{tpu_custom_call.1} parent=11 // pred_check
          %p296 = pneg %p40
        $region14: #{tpu_custom_call.1} parent=11 // pred_check_branch
          %298 = sbr.rel (%p296) target = $region16
        $region15: #{tpu_custom_call.1} parent=11 // pred_region
          _
        $region16: #{tpu_custom_call.1} parent=11 // pred_fallthru
          _
        // Predicated region
        $region17: #{tpu_custom_call.1} parent=11 // pred_check
          %p299 = pneg %p87
        $region18: #{tpu_custom_call.1} parent=11 // pred_check_branch
          %301 = sbr.rel (%p299) target = $region20
        $region19: #{tpu_custom_call.1} parent=11 // pred_region
          _
        $region20: #{tpu_custom_call.1} parent=11 // pred_fallthru
          _
        // Predicated region
        $region21: #{tpu_custom_call.1} parent=11 // pred_check
          %p302 = pneg %p108
        $region22: #{tpu_custom_call.1} parent=11 // pred_check_branch
          %304 = sbr.rel (%p302) target = $region24
        $region23: #{tpu_custom_call.1} parent=11 // pred_region
          _
        $region24: #{tpu_custom_call.1} parent=11 // pred_fallthru
          _
        // Predicated region
        $region25: #{tpu_custom_call.1} parent=11 // pred_check
          %p305 = pneg %p129
        $region26: #{tpu_custom_call.1} parent=11 // pred_check_branch
          %307 = sbr.rel (%p305) target = $region28
        $region27: #{tpu_custom_call.1} parent=11 // pred_region
          _
        $region28: #{tpu_custom_call.1} parent=11 // pred_fallthru
          _
        // Predicated region
        $region29: #{tpu_custom_call.1} parent=11 // pred_check
          %p308 = pneg %p150
        $region30: #{tpu_custom_call.1} parent=11 // pred_check_branch
          %310 = sbr.rel (%p308) target = $region32
        $region31: #{tpu_custom_call.1} parent=11 // pred_region
          _
        $region32: #{tpu_custom_call.1} parent=11 // pred_fallthru
          _
        // Predicated region
        $region33: #{tpu_custom_call.1} parent=11 // pred_check
          %p311 = pneg %p171
        $region34: #{tpu_custom_call.1} parent=11 // pred_check_branch
          %313 = sbr.rel (%p311) target = $region36
        $region35: #{tpu_custom_call.1} parent=11 // pred_region
          _
        $region36: #{tpu_custom_call.1} parent=11 // pred_fallthru
          _
        // Predicated region
        $region37: #{tpu_custom_call.1} parent=11 // pred_check
          %p314 = pneg %p192
        $region38: #{tpu_custom_call.1} parent=11 // pred_check_branch
          %316 = sbr.rel (%p314) target = $region40
        $region39: #{tpu_custom_call.1} parent=11 // pred_region
          %s318 = ssub.s32 4096, 4096
          %319 = vsyncadd [#allocation4], %s318
          %s320 = sshll.u32 [#allocation3], 4
          %s321 = int_to_ptr.vmem [resolvable:$true] %s320
          %326 = dma.hbm_to_vmem [thread:$0]  %s7, 4096, %s321, [#allocation4], 128, 128, 8
        $region40: #{tpu_custom_call.1} parent=11 // pred_fallthru
          _
        // Predicated region
        $region41: #{tpu_custom_call.1} parent=11 // pred_check
          %p327 = pneg %p213
        $region42: #{tpu_custom_call.1} parent=11 // pred_check_branch
          %329 = sbr.rel (%p327) target = $region44
        $region43: #{tpu_custom_call.1} parent=11 // pred_region
          _
        $region44: #{tpu_custom_call.1} parent=11 // pred_fallthru
          _
        // Predicated region
        $region45: #{tpu_custom_call.1} parent=11 // pred_check
          %p330 = pneg %p234
        $region46: #{tpu_custom_call.1} parent=11 // pred_check_branch
          %332 = sbr.rel (%p330) target = $region48
        $region47: #{tpu_custom_call.1} parent=11 // pred_region
          _
        $region48: #{tpu_custom_call.1} parent=11 // pred_fallthru
          _
        // Predicated region
        $region49: #{tpu_custom_call.1} parent=11 // pred_check
          %p333 = pneg %p255
        $region50: #{tpu_custom_call.1} parent=11 // pred_check_branch
          %335 = sbr.rel (%p333) target = $region52
        $region51: #{tpu_custom_call.1} parent=11 // pred_region
          _
        $region52: #{tpu_custom_call.1} parent=11 // pred_fallthru
          _
      $region12: #{tpu_custom_call.1} parent=5 // pred_fallthru
        _
      %p336 = scmp.lt.s32.totalorder %s19, 2
      // Predicated region
      $region53: #{tpu_custom_call.1} parent=5 // pred_check
        %p337 = pneg %p336
      $region54: #{tpu_custom_call.1} parent=5 // pred_check_branch
        %339 = sbr.rel (%p337) target = $region56
      $region55: #{tpu_custom_call.1} parent=5 // pred_region
        // Predicated region
        $region57: #{tpu_custom_call.1} parent=55 // pred_check
          %p340 = pneg %p60
        $region58: #{tpu_custom_call.1} parent=55 // pred_check_branch
          %342 = sbr.rel (%p340) target = $region60
        $region59: #{tpu_custom_call.1} parent=55 // pred_region
          %s343 = smul.u32 17, %s19
          %p344 = scmp.lt.s32.totalorder %s343, 33
          %s345 = scalar_select %p344, %s343, 33
          %s346 = smul.addr %s345, 8
          %s347 = scalar_lea.vmem %s1, %s346
          %s348 = smul.u32 17, %s19
        $region60: #{tpu_custom_call.1} parent=55 // pred_fallthru
          _
      $region56: #{tpu_custom_call.1} parent=5 // pred_fallthru
        _
      %p349 = scmp.le.s32.totalorder 1, %s19
      %p350 = scmp.lt.s32.totalorder %s19, 3
      %p351 = pnand %p349, %p350
      %p352 = pneg %p351
      // Predicated region
      $region61: #{tpu_custom_call.1} parent=5 // pred_check
        _
      $region62: #{tpu_custom_call.1} parent=5 // pred_check_branch
        %354 = sbr.rel (%p351) target = $region64
      $region63: #{tpu_custom_call.1} parent=5 // pred_region
        %s355 = ssub.s32 %s19, 1
        // Predicated region
        $region65: #{tpu_custom_call.1} parent=63 // pred_check
          %p356 = pneg %p192
        $region66: #{tpu_custom_call.1} parent=63 // pred_check_branch
          %358 = sbr.rel (%p356) target = $region68
        $region67: #{tpu_custom_call.1} parent=63 // pred_region
          %359 = dma.done [#allocation4], 4096
        $region68: #{tpu_custom_call.1} parent=63 // pred_fallthru
          _
        %p360 = pneg %p40
        %p361 = pneg %p37
        %s362 = smul.u32 17, %s24
        %p363 = scmp.lt.s32.totalorder %s362, 33
        %s364 = scalar_select %p363, %s362, 33
        %s365 = smul.addr %s364, 8
        %s366 = scalar_lea.vmem %s1, %s365
        %p367 = pneg %p66
        %p368 = pneg %p63
        %p369 = pneg %p87
        %p370 = pneg %p84
        %p371 = pneg %p108
        %p372 = pneg %p105
        %p373 = pneg %p129
        %p374 = pneg %p126
        %p375 = pneg %p150
        %p376 = pneg %p147
        %p377 = pneg %p171
        %p378 = pneg %p168
        %p379 = pneg %p192
        %p380 = pneg %p189
        %p381 = pneg %p213
        %p382 = pneg %p210
        %p383 = pneg %p234
        %p384 = pneg %p231
        %p385 = pneg %p255
        %p386 = pneg %p252
        %p387 = pneg %p281
        %p388 = pneg %p278
        %s389 = smul.u32 17, %s24
        %p390 = scmp.lt.s32.totalorder %s389, 33
        %s391 = scalar_select %p390, %s389, 33
        %s392 = smul.addr %s391, 8
        %s393 = scalar_lea.vmem %s11, %s392
        %s394 = smul.u32 17, %s24
        %p395 = scmp.lt.s32.totalorder %s394, 33
        %s396 = scalar_select %p395, %s394, 33
        %s397 = smul.addr %s396, 8
        %s398 = scalar_lea.vmem %s1, %s397
        %s399 = smul.u32 17, %s24
        %s400 = smul.u32 17, %s24
        %p401 = scmp.lt.s32.totalorder %s400, 33
        %s402 = scalar_select %p401, %s400, 33
        %s403 = smul.addr %s402, 8
        %s404 = scalar_lea.vmem %s11, %s403
        %s405 = smul.u32 17, %s24
        %v407 = vld [vmem:[%s398] sm:$0xff]
        %v408 = vld [vmem:[%s398 + $0x8] sm:$0xff]
        %v409 = vld [vmem:[%s398 + $0x10] sm:$0xff]
        %v410 = vld [vmem:[%s398 + $0x18] sm:$0xff]
        %v411 = vld [vmem:[%s398 + $0x20] sm:$0xff]
        %v412 = vld [vmem:[%s398 + $0x28] sm:$0xff]
        %v413 = vld [vmem:[%s398 + $0x30] sm:$0xff]
        %v414 = vld [vmem:[%s398 + $0x38] sm:$0xff]
        %v415 = vld [vmem:[%s398 + $0x40] sm:$0xff]
        %v416 = vld [vmem:[%s398 + $0x48] sm:$0xff]
        %v417 = vld [vmem:[%s398 + $0x50] sm:$0xff]
        %v418 = vld [vmem:[%s398 + $0x58] sm:$0xff]
        %v419 = vld [vmem:[%s398 + $0x60] sm:$0xff]
        %v420 = vld [vmem:[%s398 + $0x68] sm:$0xff]
        %v421 = vld [vmem:[%s398 + $0x70] sm:$0xff]
        %v422 = vld [vmem:[%s398 + $0x78] sm:$0xff]
        %v423 = vld [vmem:[%s398 + $0x80] sm:$0xff]
        %v424 = vld [vmem:[%s2] sm:$0x77]
        %v425 = vpack.c.bf16 %v408, %v407
        %v426 = vpack.c.bf16 %v410, %v409
        %v427 = vpack.c.bf16 %v412, %v411
        %v428 = vpack.c.bf16 %v414, %v413
        %v429 = vpack.c.bf16 %v416, %v415
        %v430 = vpack.c.bf16 %v418, %v417
        %v431 = vpack.c.bf16 %v420, %v419
        %v432 = vpack.c.bf16 %v422, %v421
        %v433 = vpack.c.bf16 %v423, %v423
        %v434 = vld [vmem:[%s3] sm:$0xff]
        %v435 = vld [vmem:[%s3 + $0x8] sm:$0x33]
        %v436 = vld [vmem:[%s4] sm:$0x3]
        %v438 = vlaneseq
        %v439 = vshrl.u32 %v438, 7
        %v440 = vsub.s32 0, %v439
        %v441 = vrot.slane %v436, %v440
        %v442 = vlaneseq
        %v443 = vshrl.u32 %v442, 7
        %v444 = vsub.s32 1, %v443
        %v445 = vrot.slane %v436, %v444
        %v450 = vunpack.c.l.b16 %v434
        %v451 = vunpack.c.h.b16 %v434
        %v452 = vunpack.c.l.b16 %v435
        %v453 = vunpack.c.h.b16 %v435
        %v454 = vpack.c.b16 %v452, %v450
        %v455 = vpack.c.b16 %v453, %v451
        %vm456 = vcmask 89088
        %v458 = vsel %vm456, %v425, 0
        %v461 = vsel %vm456, %v426, 0
        %v464 = vsel %vm456, %v427, 0
        %v467 = vsel %vm456, %v428, 0
        %v470 = vsel %vm456, %v429, 0
        %v473 = vsel %vm456, %v430, 0
        %v476 = vsel %vm456, %v431, 0
        %v479 = vsel %vm456, %v432, 0
        %v482 = vsel %vm456, %v433, 0
        %vm484 = vcmask 1044480
        %vm485 = vcmask 1045504
        %v486 = vsel %vm484, 4294967295, 65535
        %v487 = vsel %vm485, %v486, 0
        %v489 = vand.u32 %v454, %v487
        %v492 = vand.u32 %v455, %v487
        %494 = vmatprep.subr.bf16.mxu0 %v492
        %495 = vmatpush1.bf16.msra.mxu0 %v489
        %496 = vmatprep.subr.bf16.mxu0 0
        %497 = vmatpush1.bf16.msra.mxu0 0
        %498 = vmatprep.subr.bf16.mxu0 0
        %499 = vmatpush1.bf16.msra.mxu0 0
        %500 = vmatprep.subr.bf16.mxu0 0
        %501 = vmatpush1.bf16.msra.mxu0 0
        %502 = vmatprep.subr.bf16.mxu0 0
        %503 = vmatpush1.bf16.msra.mxu0 0
        %504 = vmatprep.subr.bf16.mxu0 0
        %505 = vmatpush1.bf16.msra.mxu0 0
        %506 = vmatprep.subr.bf16.mxu0 0
        %507 = vmatpush1.bf16.msra.mxu0 0
        %508 = vmatprep.subr.bf16.mxu0 0
        %509 = vmatpush1.bf16.msra.mxu0 0
        %510 = vmatprep.subr.bf16.mxu0 0
        %511 = vmatpush1.bf16.msra.mxu0 0
        %512 = vmatprep.subr.bf16.mxu0 0
        %513 = vmatpush1.bf16.msra.mxu0 0
        %514 = vmatprep.subr.bf16.mxu0 0
        %515 = vmatpush1.bf16.msra.mxu0 0
        %516 = vmatprep.subr.bf16.mxu0 0
        %517 = vmatpush1.bf16.msra.mxu0 0
        %518 = vmatprep.subr.bf16.mxu0 0
        %519 = vmatpush1.bf16.msra.mxu0 0
        %520 = vmatprep.subr.bf16.mxu0 0
        %521 = vmatpush1.bf16.msra.mxu0 0
        %522 = vmatprep.subr.bf16.mxu0 0
        %523 = vmatpush1.bf16.msra.mxu0 0
        %524 = vmatprep.subr.bf16.mxu0 0
        %525 = vmatpush1.bf16.msra.mxu0 0
        %526 = vmatprep.mubr.bf16.mxu0 0
        %527 = vmatmul.mubr.bf16.gmra.mrb[0].mxu0 %v458
        %v528 = vpop.f32.mrb[0].mxu0
        %v529 = vadd.f32 %v441, %v528
        %v530 = vpop.f32.mrb[0].mxu0
        %v531 = vadd.f32 %v445, %v530
        %v532 = vpop.f32.mrb[0].mxu0
        %v533 = vadd.f32 %v441, %v532
        %v534 = vpop.f32.mrb[0].mxu0
        %v535 = vadd.f32 %v445, %v534
        %536 = vmatprep.mubr.bf16.mxu0 0
        %537 = vmatmul.mubr.bf16.gmra.mrb[0].mxu0 %v461
        %v538 = vpop.f32.mrb[0].mxu0
        %v539 = vadd.f32 %v441, %v538
        %v540 = vpop.f32.mrb[0].mxu0
        %v541 = vadd.f32 %v445, %v540
        %v542 = vpop.f32.mrb[0].mxu0
        %v543 = vadd.f32 %v441, %v542
        %v544 = vpop.f32.mrb[0].mxu0
        %v545 = vadd.f32 %v445, %v544
        %546 = vmatprep.mubr.bf16.mxu0 0
        %547 = vmatmul.mubr.bf16.gmra.mrb[0].mxu0 %v464
        %v548 = vpop.f32.mrb[0].mxu0
        %v549 = vadd.f32 %v441, %v548
        %v550 = vpop.f32.mrb[0].mxu0
        %v551 = vadd.f32 %v445, %v550
        %v552 = vpop.f32.mrb[0].mxu0
        %v553 = vadd.f32 %v441, %v552
        %v554 = vpop.f32.mrb[0].mxu0
        %v555 = vadd.f32 %v445, %v554
        %556 = vmatprep.mubr.bf16.mxu0 0
        %557 = vmatmul.mubr.bf16.gmra.mrb[0].mxu0 %v467
        %v558 = vpop.f32.mrb[0].mxu0
        %v559 = vadd.f32 %v441, %v558
        %v560 = vpop.f32.mrb[0].mxu0
        %v561 = vadd.f32 %v445, %v560
        %v562 = vpop.f32.mrb[0].mxu0
        %v563 = vadd.f32 %v441, %v562
        %v564 = vpop.f32.mrb[0].mxu0
        %v565 = vadd.f32 %v445, %v564
        %566 = vmatprep.mubr.bf16.mxu0 0
        %567 = vmatmul.mubr.bf16.gmra.mrb[0].mxu0 %v470
        %v568 = vpop.f32.mrb[0].mxu0
        %v569 = vadd.f32 %v441, %v568
        %v570 = vpop.f32.mrb[0].mxu0
        %v571 = vadd.f32 %v445, %v570
        %v572 = vpop.f32.mrb[0].mxu0
        %v573 = vadd.f32 %v441, %v572
        %v574 = vpop.f32.mrb[0].mxu0
        %v575 = vadd.f32 %v445, %v574
        %576 = vmatprep.mubr.bf16.mxu0 0
        %577 = vmatmul.mubr.bf16.gmra.mrb[0].mxu0 %v473
        %v578 = vpop.f32.mrb[0].mxu0
        %v579 = vadd.f32 %v441, %v578
        %v580 = vpop.f32.mrb[0].mxu0
        %v581 = vadd.f32 %v445, %v580
        %v582 = vpop.f32.mrb[0].mxu0
        %v583 = vadd.f32 %v441, %v582
        %v584 = vpop.f32.mrb[0].mxu0
        %v585 = vadd.f32 %v445, %v584
        %586 = vmatprep.mubr.bf16.mxu0 0
        %587 = vmatmul.mubr.bf16.gmra.mrb[0].mxu0 %v476
        %v588 = vpop.f32.mrb[0].mxu0
        %v589 = vadd.f32 %v441, %v588
        %v590 = vpop.f32.mrb[0].mxu0
        %v591 = vadd.f32 %v445, %v590
        %v592 = vpop.f32.mrb[0].mxu0
        %v593 = vadd.f32 %v441, %v592
        %v594 = vpop.f32.mrb[0].mxu0
        %v595 = vadd.f32 %v445, %v594
        %596 = vmatprep.mubr.bf16.mxu0 0
        %597 = vmatmul.mubr.bf16.gmra.mrb[0].mxu0 %v479
        %v598 = vpop.f32.mrb[0].mxu0
        %v599 = vadd.f32 %v441, %v598
        %v600 = vpop.f32.mrb[0].mxu0
        %v601 = vadd.f32 %v445, %v600
        %v602 = vpop.f32.mrb[0].mxu0
        %v603 = vadd.f32 %v441, %v602
        %v604 = vpop.f32.mrb[0].mxu0
        %v605 = vadd.f32 %v445, %v604
        %606 = vmatprep.mubr.bf16.mxu0 0
        %607 = vmatmul.mubr.bf16.gmra.mrb[0].mxu0 %v482
        %v608 = vpop.f32.mrb[0].mxu0
        %v609 = vadd.f32 %v441, %v608
        %v610 = vpop.f32.mrb[0].mxu0
        %v611 = vadd.f32 %v445, %v610
        %v612 = vpop.f32.mrb[0].mxu0
        %v613 = vpop.f32.mrb[0].mxu0
        %614 = vdwg.mxu0
        %vm615 = vcmp.ge.f32.partialorder %v529, 0.0
        %vm616 = vcmp.ge.f32.partialorder %v531, 0.0
        %vm617 = vcmp.ge.f32.partialorder %v533, 0.0
        %vm618 = vcmp.ge.f32.partialorder %v535, 0.0
        %vm619 = vcmp.ge.f32.partialorder %v539, 0.0
        %vm620 = vcmp.ge.f32.partialorder %v541, 0.0
        %vm621 = vcmp.ge.f32.partialorder %v543, 0.0
        %vm622 = vcmp.ge.f32.partialorder %v545, 0.0
        %vm623 = vcmp.ge.f32.partialorder %v549, 0.0
        %vm624 = vcmp.ge.f32.partialorder %v551, 0.0
        %vm625 = vcmp.ge.f32.partialorder %v553, 0.0
        %vm626 = vcmp.ge.f32.partialorder %v555, 0.0
        %vm627 = vcmp.ge.f32.partialorder %v559, 0.0
        %vm628 = vcmp.ge.f32.partialorder %v561, 0.0
        %vm629 = vcmp.ge.f32.partialorder %v563, 0.0
        %vm630 = vcmp.ge.f32.partialorder %v565, 0.0
        %vm631 = vcmp.ge.f32.partialorder %v569, 0.0
        %vm632 = vcmp.ge.f32.partialorder %v571, 0.0
        %vm633 = vcmp.ge.f32.partialorder %v573, 0.0
        %vm634 = vcmp.ge.f32.partialorder %v575, 0.0
        %vm635 = vcmp.ge.f32.partialorder %v579, 0.0
        %vm636 = vcmp.ge.f32.partialorder %v581, 0.0
        %vm637 = vcmp.ge.f32.partialorder %v583, 0.0
        %vm638 = vcmp.ge.f32.partialorder %v585, 0.0
        %vm639 = vcmp.ge.f32.partialorder %v589, 0.0
        %vm640 = vcmp.ge.f32.partialorder %v591, 0.0
        %vm641 = vcmp.ge.f32.partialorder %v593, 0.0
        %vm642 = vcmp.ge.f32.partialorder %v595, 0.0
        %vm643 = vcmp.ge.f32.partialorder %v599, 0.0
        %vm644 = vcmp.ge.f32.partialorder %v601, 0.0
        %vm645 = vcmp.ge.f32.partialorder %v603, 0.0
        %vm646 = vcmp.ge.f32.partialorder %v605, 0.0
        %vm647 = vcmp.ge.f32.partialorder %v609, 0.0
        %vm648 = vcmp.ge.f32.partialorder %v611, 0.0
        %v650 = vlaneseq
        %v651 = vshrl.u32 %v650, 7
        %v652 = vsub.s32 0, %v651
        %v653 = vrot.slane %v424, %v652
        %v654 = vlaneseq
        %v655 = vshrl.u32 %v654, 7
        %v656 = vsub.s32 4, %v655
        %v657 = vrot.slane %v424, %v656
        %v660 = vlaneseq
        %v661 = vshrl.u32 %v660, 7
        %v662 = vsub.s32 0, %v661
        %v663 = vrot.slane %v653, %v662
        %v664 = vlaneseq
        %v665 = vshrl.u32 %v664, 7
        %v666 = vsub.s32 0, %v665
        %v667 = vrot.slane %v657, %v666
        %v668 = vmul.f32 %v663, %v529
        %v669 = vmul.f32 %v667, %v531
        %v670 = vmul.f32 %v663, %v533
        %v671 = vmul.f32 %v667, %v535
        %v672 = vmul.f32 %v663, %v539
        %v673 = vmul.f32 %v667, %v541
        %v674 = vmul.f32 %v663, %v543
        %v675 = vmul.f32 %v667, %v545
        %v676 = vmul.f32 %v663, %v549
        %v677 = vmul.f32 %v667, %v551
        %v678 = vmul.f32 %v663, %v553
        %v679 = vmul.f32 %v667, %v555
        %v680 = vmul.f32 %v663, %v559
        %v681 = vmul.f32 %v667, %v561
        %v682 = vmul.f32 %v663, %v563
        %v683 = vmul.f32 %v667, %v565
        %v684 = vmul.f32 %v663, %v569
        %v685 = vmul.f32 %v667, %v571
        %v686 = vmul.f32 %v663, %v573
        %v687 = vmul.f32 %v667, %v575
        %v688 = vmul.f32 %v663, %v579
        %v689 = vmul.f32 %v667, %v581
        %v690 = vmul.f32 %v663, %v583
        %v691 = vmul.f32 %v667, %v585
        %v692 = vmul.f32 %v663, %v589
        %v693 = vmul.f32 %v667, %v591
        %v694 = vmul.f32 %v663, %v593
        %v695 = vmul.f32 %v667, %v595
        %v696 = vmul.f32 %v663, %v599
        %v697 = vmul.f32 %v667, %v601
        %v698 = vmul.f32 %v663, %v603
        %v699 = vmul.f32 %v667, %v605
        %v700 = vmul.f32 %v663, %v609
        %v701 = vmul.f32 %v667, %v611
        %v702 = vsel %vm615, %v529, %v668
        %v703 = vsel %vm616, %v531, %v669
        %v704 = vsel %vm617, %v533, %v670
        %v705 = vsel %vm618, %v535, %v671
        %v706 = vsel %vm619, %v539, %v672
        %v707 = vsel %vm620, %v541, %v673
        %v708 = vsel %vm621, %v543, %v674
        %v709 = vsel %vm622, %v545, %v675
        %v710 = vsel %vm623, %v549, %v676
        %v711 = vsel %vm624, %v551, %v677
        %v712 = vsel %vm625, %v553, %v678
        %v713 = vsel %vm626, %v555, %v679
        %v714 = vsel %vm627, %v559, %v680
        %v715 = vsel %vm628, %v561, %v681
        %v716 = vsel %vm629, %v563, %v682
        %v717 = vsel %vm630, %v565, %v683
        %v718 = vsel %vm631, %v569, %v684
        %v719 = vsel %vm632, %v571, %v685
        %v720 = vsel %vm633, %v573, %v686
        %v721 = vsel %vm634, %v575, %v687
        %v722 = vsel %vm635, %v579, %v688
        %v723 = vsel %vm636, %v581, %v689
        %v724 = vsel %vm637, %v583, %v690
        %v725 = vsel %vm638, %v585, %v691
        %v726 = vsel %vm639, %v589, %v692
        %v727 = vsel %vm640, %v591, %v693
        %v728 = vsel %vm641, %v593, %v694
        %v729 = vsel %vm642, %v595, %v695
        %v730 = vsel %vm643, %v599, %v696
        %v731 = vsel %vm644, %v601, %v697
        %v732 = vsel %vm645, %v603, %v698
        %v733 = vsel %vm646, %v605, %v699
        %v734 = vsel %vm647, %v609, %v700
        %v735 = vsel %vm648, %v611, %v701
        %v736 = vpack.c.bf16 %v704, %v702
        %v737 = vpack.c.bf16 %v705, %v703
        %v738 = vpack.c.bf16 %v708, %v706
        %v739 = vpack.c.bf16 %v709, %v707
        %v740 = vpack.c.bf16 %v712, %v710
        %v741 = vpack.c.bf16 %v713, %v711
        %v742 = vpack.c.bf16 %v716, %v714
        %v743 = vpack.c.bf16 %v717, %v715
        %v744 = vpack.c.bf16 %v720, %v718
        %v745 = vpack.c.bf16 %v721, %v719
        %v746 = vpack.c.bf16 %v724, %v722
        %v747 = vpack.c.bf16 %v725, %v723
        %v748 = vpack.c.bf16 %v728, %v726
        %v749 = vpack.c.bf16 %v729, %v727
        %v750 = vpack.c.bf16 %v732, %v730
        %v751 = vpack.c.bf16 %v733, %v731
        %v752 = vpack.c.bf16 %v734, %v734
        %v753 = vpack.c.bf16 %v735, %v735
        %v754 = vld [vmem:[%s5] sm:$0xff]
        %v755 = vld [vmem:[%s5 + $0x8] sm:$0xff]
        %v756 = vld [vmem:[%s5 + $0x10] sm:$0xff]
        %v757 = vld [vmem:[%s5 + $0x18] sm:$0xff]
        %v758 = vld [vmem:[%s5 + $0x20] sm:$0xff]
        %v759 = vld [vmem:[%s5 + $0x28] sm:$0xff]
        %v760 = vld [vmem:[%s5 + $0x30] sm:$0xff]
        %v761 = vld [vmem:[%s5 + $0x38] sm:$0xff]
        %v762 = vld [vmem:[%s5 + $0x40] sm:$0xff]
        %v763 = vld [vmem:[%s5 + $0x48] sm:$0xff]
        %v764 = vld [vmem:[%s5 + $0x50] sm:$0xff]
        %v765 = vld [vmem:[%s5 + $0x58] sm:$0xff]
        %v766 = vld [vmem:[%s5 + $0x60] sm:$0xff]
        %v767 = vld [vmem:[%s5 + $0x68] sm:$0xff]
        %v768 = vld [vmem:[%s5 + $0x70] sm:$0xff]
        %v769 = vld [vmem:[%s5 + $0x78] sm:$0xff]
        %v770 = vld [vmem:[%s5 + $0x80] sm:$0xff]
        %v771 = vld [vmem:[%s5 + $0x88] sm:$0xff]
        %v772 = vld [vmem:[%s5 + $0x90] sm:$0xff]
        %v773 = vld [vmem:[%s5 + $0x98] sm:$0xff]
        %v774 = vld [vmem:[%s5 + $0xa0] sm:$0xff]
        %v775 = vld [vmem:[%s5 + $0xa8] sm:$0xff]
        %v776 = vld [vmem:[%s5 + $0xb0] sm:$0xff]
        %v777 = vld [vmem:[%s5 + $0xb8] sm:$0xff]
        %v778 = vld [vmem:[%s5 + $0xc0] sm:$0xff]
        %v779 = vld [vmem:[%s5 + $0xc8] sm:$0xff]
        %v780 = vld [vmem:[%s5 + $0xd0] sm:$0xff]
        %v781 = vld [vmem:[%s5 + $0xd8] sm:$0xff]
        %v782 = vld [vmem:[%s5 + $0xe0] sm:$0xff]
        %v783 = vld [vmem:[%s5 + $0xe8] sm:$0xff]
        %v784 = vld [vmem:[%s5 + $0xf0] sm:$0xff]
        %v785 = vld [vmem:[%s5 + $0xf8] sm:$0xff]
        %v786 = vld [vmem:[%s6] sm:$0x3]
        %v788 = vlaneseq
        %v789 = vshrl.u32 %v788, 7
        %v790 = vsub.s32 0, %v789
        %v791 = vrot.slane %v786, %v790
        %v792 = vlaneseq
        %v793 = vshrl.u32 %v792, 7
        %v794 = vsub.s32 1, %v793
        %v795 = vrot.slane %v786, %v794
        %v830 = vunpack.c.l.b16 %v754
        %v831 = vunpack.c.h.b16 %v754
        %v832 = vunpack.c.l.b16 %v755
        %v833 = vunpack.c.h.b16 %v755
        %v834 = vunpack.c.l.b16 %v756
        %v835 = vunpack.c.h.b16 %v756
        %v836 = vunpack.c.l.b16 %v757
        %v837 = vunpack.c.h.b16 %v757
        %v838 = vunpack.c.l.b16 %v758
        %v839 = vunpack.c.h.b16 %v758
        %v840 = vunpack.c.l.b16 %v759
        %v841 = vunpack.c.h.b16 %v759
        %v842 = vunpack.c.l.b16 %v760
        %v843 = vunpack.c.h.b16 %v760
        %v844 = vunpack.c.l.b16 %v761
        %v845 = vunpack.c.h.b16 %v761
        %v846 = vunpack.c.l.b16 %v762
        %v847 = vunpack.c.h.b16 %v762
        %v848 = vunpack.c.l.b16 %v763
        %v849 = vunpack.c.h.b16 %v763
        %v850 = vunpack.c.l.b16 %v764
        %v851 = vunpack.c.h.b16 %v764
        %v852 = vunpack.c.l.b16 %v765
        %v853 = vunpack.c.h.b16 %v765
        %v854 = vunpack.c.l.b16 %v766
        %v855 = vunpack.c.h.b16 %v766
        %v856 = vunpack.c.l.b16 %v767
        %v857 = vunpack.c.h.b16 %v767
        %v858 = vunpack.c.l.b16 %v768
        %v859 = vunpack.c.h.b16 %v768
        %v860 = vunpack.c.l.b16 %v769
        %v861 = vunpack.c.h.b16 %v769
        %v862 = vunpack.c.l.b16 %v770
        %v863 = vunpack.c.h.b16 %v770
        %v864 = vunpack.c.l.b16 %v771
        %v865 = vunpack.c.h.b16 %v771
        %v866 = vunpack.c.l.b16 %v772
        %v867 = vunpack.c.h.b16 %v772
        %v868 = vunpack.c.l.b16 %v773
        %v869 = vunpack.c.h.b16 %v773
        %v870 = vunpack.c.l.b16 %v774
        %v871 = vunpack.c.h.b16 %v774
        %v872 = vunpack.c.l.b16 %v775
        %v873 = vunpack.c.h.b16 %v775
        %v874 = vunpack.c.l.b16 %v776
        %v875 = vunpack.c.h.b16 %v776
        %v876 = vunpack.c.l.b16 %v777
        %v877 = vunpack.c.h.b16 %v777
        %v878 = vunpack.c.l.b16 %v778
        %v879 = vunpack.c.h.b16 %v778
        %v880 = vunpack.c.l.b16 %v779
        %v881 = vunpack.c.h.b16 %v779
        %v882 = vunpack.c.l.b16 %v780
        %v883 = vunpack.c.h.b16 %v780
        %v884 = vunpack.c.l.b16 %v781
        %v885 = vunpack.c.h.b16 %v781
        %v886 = vunpack.c.l.b16 %v782
        %v887 = vunpack.c.h.b16 %v782
        %v888 = vunpack.c.l.b16 %v783
        %v889 = vunpack.c.h.b16 %v783
        %v890 = vunpack.c.l.b16 %v784
        %v891 = vunpack.c.h.b16 %v784
        %v892 = vunpack.c.l.b16 %v785
        %v893 = vunpack.c.h.b16 %v785
        %v894 = vpack.c.b16 %v832, %v830
        %v895 = vpack.c.b16 %v833, %v831
        %v896 = vpack.c.b16 %v836, %v834
        %v897 = vpack.c.b16 %v837, %v835
        %v898 = vpack.c.b16 %v840, %v838
        %v899 = vpack.c.b16 %v841, %v839
        %v900 = vpack.c.b16 %v844, %v842
        %v901 = vpack.c.b16 %v845, %v843
        %v902 = vpack.c.b16 %v848, %v846
        %v903 = vpack.c.b16 %v849, %v847
        %v904 = vpack.c.b16 %v852, %v850
        %v905 = vpack.c.b16 %v853, %v851
        %v906 = vpack.c.b16 %v856, %v854
        %v907 = vpack.c.b16 %v857, %v855
        %v908 = vpack.c.b16 %v860, %v858
        %v909 = vpack.c.b16 %v861, %v859
        %v910 = vpack.c.b16 %v864, %v862
        %v911 = vpack.c.b16 %v865, %v863
        %v912 = vpack.c.b16 %v868, %v866
        %v913 = vpack.c.b16 %v869, %v867
        %v914 = vpack.c.b16 %v872, %v870
        %v915 = vpack.c.b16 %v873, %v871
        %v916 = vpack.c.b16 %v876, %v874
        %v917 = vpack.c.b16 %v877, %v875
        %v918 = vpack.c.b16 %v880, %v878
        %v919 = vpack.c.b16 %v881, %v879
        %v920 = vpack.c.b16 %v884, %v882
        %v921 = vpack.c.b16 %v885, %v883
        %v922 = vpack.c.b16 %v888, %v886
        %v923 = vpack.c.b16 %v889, %v887
        %v924 = vpack.c.b16 %v892, %v890
        %v925 = vpack.c.b16 %v893, %v891
        %958 = vmatprep.subr.bf16.mxu0 %v895
        %959 = vmatpush1.bf16.msra.mxu0 %v894
        %960 = vmatprep.subr.bf16.mxu0 %v897
        %961 = vmatpush1.bf16.msra.mxu0 %v896
        %962 = vmatprep.subr.bf16.mxu0 %v899
        %963 = vmatpush1.bf16.msra.mxu0 %v898
        %964 = vmatprep.subr.bf16.mxu0 %v901
        %965 = vmatpush1.bf16.msra.mxu0 %v900
        %966 = vmatprep.subr.bf16.mxu0 %v903
        %967 = vmatpush1.bf16.msra.mxu0 %v902
        %968 = vmatprep.subr.bf16.mxu0 %v905
        %969 = vmatpush1.bf16.msra.mxu0 %v904
        %970 = vmatprep.subr.bf16.mxu0 %v907
        %971 = vmatpush1.bf16.msra.mxu0 %v906
        %972 = vmatprep.subr.bf16.mxu0 %v909
        %973 = vmatpush1.bf16.msra.mxu0 %v908
        %974 = vmatprep.subr.bf16.mxu0 %v911
        %975 = vmatpush1.bf16.msra.mxu0 %v910
        %976 = vmatprep.subr.bf16.mxu0 %v913
        %977 = vmatpush1.bf16.msra.mxu0 %v912
        %978 = vmatprep.subr.bf16.mxu0 %v915
        %979 = vmatpush1.bf16.msra.mxu0 %v914
        %980 = vmatprep.subr.bf16.mxu0 %v917
        %981 = vmatpush1.bf16.msra.mxu0 %v916
        %982 = vmatprep.subr.bf16.mxu0 %v919
        %983 = vmatpush1.bf16.msra.mxu0 %v918
        %984 = vmatprep.subr.bf16.mxu0 %v921
        %985 = vmatpush1.bf16.msra.mxu0 %v920
        %986 = vmatprep.subr.bf16.mxu0 %v923
        %987 = vmatpush1.bf16.msra.mxu0 %v922
        %988 = vmatprep.subr.bf16.mxu0 %v925
        %989 = vmatpush1.bf16.msra.mxu0 %v924
        %990 = vmatprep.mubr.bf16.mxu0 %v737
        %991 = vmatmul.mubr.bf16.gmra.mrb[0].mxu0 %v736
        %v992 = vpop.f32.mrb[0].mxu0
        %v993 = vadd.f32 %v791, %v992
        %v994 = vpop.f32.mrb[0].mxu0
        %v995 = vadd.f32 %v795, %v994
        %v996 = vpop.f32.mrb[0].mxu0
        %v997 = vadd.f32 %v791, %v996
        %v998 = vpop.f32.mrb[0].mxu0
        %v999 = vadd.f32 %v795, %v998
        %1000 = vmatprep.mubr.bf16.mxu0 %v739
        %1001 = vmatmul.mubr.bf16.gmra.mrb[0].mxu0 %v738
        %v1002 = vpop.f32.mrb[0].mxu0
        %v1003 = vadd.f32 %v791, %v1002
        %v1004 = vpop.f32.mrb[0].mxu0
        %v1005 = vadd.f32 %v795, %v1004
        %v1006 = vpop.f32.mrb[0].mxu0
        %v1007 = vadd.f32 %v791, %v1006
        %v1008 = vpop.f32.mrb[0].mxu0
        %v1009 = vadd.f32 %v795, %v1008
        %1010 = vmatprep.mubr.bf16.mxu0 %v741
        %1011 = vmatmul.mubr.bf16.gmra.mrb[0].mxu0 %v740
        %v1012 = vpop.f32.mrb[0].mxu0
        %v1013 = vadd.f32 %v791, %v1012
        %v1014 = vpop.f32.mrb[0].mxu0
        %v1015 = vadd.f32 %v795, %v1014
        %v1016 = vpop.f32.mrb[0].mxu0
        %v1017 = vadd.f32 %v791, %v1016
        %v1018 = vpop.f32.mrb[0].mxu0
        %v1019 = vadd.f32 %v795, %v1018
        %1020 = vmatprep.mubr.bf16.mxu0 %v743
        %1021 = vmatmul.mubr.bf16.gmra.mrb[0].mxu0 %v742
        %v1022 = vpop.f32.mrb[0].mxu0
        %v1023 = vadd.f32 %v791, %v1022
        %v1024 = vpop.f32.mrb[0].mxu0
        %v1025 = vadd.f32 %v795, %v1024
        %v1026 = vpop.f32.mrb[0].mxu0
        %v1027 = vadd.f32 %v791, %v1026
        %v1028 = vpop.f32.mrb[0].mxu0
        %v1029 = vadd.f32 %v795, %v1028
        %1030 = vmatprep.mubr.bf16.mxu0 %v745
        %1031 = vmatmul.mubr.bf16.gmra.mrb[0].mxu0 %v744
        %v1032 = vpop.f32.mrb[0].mxu0
        %v1033 = vadd.f32 %v791, %v1032
        %v1034 = vpop.f32.mrb[0].mxu0
        %v1035 = vadd.f32 %v795, %v1034
        %v1036 = vpop.f32.mrb[0].mxu0
        %v1037 = vadd.f32 %v791, %v1036
        %v1038 = vpop.f32.mrb[0].mxu0
        %v1039 = vadd.f32 %v795, %v1038
        %1040 = vmatprep.mubr.bf16.mxu0 %v747
        %1041 = vmatmul.mubr.bf16.gmra.mrb[0].mxu0 %v746
        %v1042 = vpop.f32.mrb[0].mxu0
        %v1043 = vadd.f32 %v791, %v1042
        %v1044 = vpop.f32.mrb[0].mxu0
        %v1045 = vadd.f32 %v795, %v1044
        %v1046 = vpop.f32.mrb[0].mxu0
        %v1047 = vadd.f32 %v791, %v1046
        %v1048 = vpop.f32.mrb[0].mxu0
        %v1049 = vadd.f32 %v795, %v1048
        %1050 = vmatprep.mubr.bf16.mxu0 %v749
        %1051 = vmatmul.mubr.bf16.gmra.mrb[0].mxu0 %v748
        %v1052 = vpop.f32.mrb[0].mxu0
        %v1053 = vadd.f32 %v791, %v1052
        %v1054 = vpop.f32.mrb[0].mxu0
        %v1055 = vadd.f32 %v795, %v1054
        %v1056 = vpop.f32.mrb[0].mxu0
        %v1057 = vadd.f32 %v791, %v1056
        %v1058 = vpop.f32.mrb[0].mxu0
        %v1059 = vadd.f32 %v795, %v1058
        %1060 = vmatprep.mubr.bf16.mxu0 %v751
        %1061 = vmatmul.mubr.bf16.gmra.mrb[0].mxu0 %v750
        %v1062 = vpop.f32.mrb[0].mxu0
        %v1063 = vadd.f32 %v791, %v1062
        %v1064 = vpop.f32.mrb[0].mxu0
        %v1065 = vadd.f32 %v795, %v1064
        %v1066 = vpop.f32.mrb[0].mxu0
        %v1067 = vadd.f32 %v791, %v1066
        %v1068 = vpop.f32.mrb[0].mxu0
        %v1069 = vadd.f32 %v795, %v1068
        %1070 = vmatprep.mubr.bf16.mxu0 %v753
        %1071 = vmatmul.mubr.bf16.gmra.mrb[0].mxu0 %v752
        %v1072 = vpop.f32.mrb[0].mxu0
        %v1073 = vadd.f32 %v791, %v1072
        %v1074 = vpop.f32.mrb[0].mxu0
        %v1075 = vadd.f32 %v795, %v1074
        %v1076 = vpop.f32.mrb[0].mxu0
        %v1077 = vpop.f32.mrb[0].mxu0
        %1078 = vdwg.mxu0
        %vm1079 = vcmp.ge.f32.partialorder %v993, 0.0
        %vm1080 = vcmp.ge.f32.partialorder %v995, 0.0
        %vm1081 = vcmp.ge.f32.partialorder %v997, 0.0
        %vm1082 = vcmp.ge.f32.partialorder %v999, 0.0
        %vm1083 = vcmp.ge.f32.partialorder %v1003, 0.0
        %vm1084 = vcmp.ge.f32.partialorder %v1005, 0.0
        %vm1085 = vcmp.ge.f32.partialorder %v1007, 0.0
        %vm1086 = vcmp.ge.f32.partialorder %v1009, 0.0
        %vm1087 = vcmp.ge.f32.partialorder %v1013, 0.0
        %vm1088 = vcmp.ge.f32.partialorder %v1015, 0.0
        %vm1089 = vcmp.ge.f32.partialorder %v1017, 0.0
        %vm1090 = vcmp.ge.f32.partialorder %v1019, 0.0
        %vm1091 = vcmp.ge.f32.partialorder %v1023, 0.0
        %vm1092 = vcmp.ge.f32.partialorder %v1025, 0.0
        %vm1093 = vcmp.ge.f32.partialorder %v1027, 0.0
        %vm1094 = vcmp.ge.f32.partialorder %v1029, 0.0
        %vm1095 = vcmp.ge.f32.partialorder %v1033, 0.0
        %vm1096 = vcmp.ge.f32.partialorder %v1035, 0.0
        %vm1097 = vcmp.ge.f32.partialorder %v1037, 0.0
        %vm1098 = vcmp.ge.f32.partialorder %v1039, 0.0
        %vm1099 = vcmp.ge.f32.partialorder %v1043, 0.0
        %vm1100 = vcmp.ge.f32.partialorder %v1045, 0.0
        %vm1101 = vcmp.ge.f32.partialorder %v1047, 0.0
        %vm1102 = vcmp.ge.f32.partialorder %v1049, 0.0
        %vm1103 = vcmp.ge.f32.partialorder %v1053, 0.0
        %vm1104 = vcmp.ge.f32.partialorder %v1055, 0.0
        %vm1105 = vcmp.ge.f32.partialorder %v1057, 0.0
        %vm1106 = vcmp.ge.f32.partialorder %v1059, 0.0
        %vm1107 = vcmp.ge.f32.partialorder %v1063, 0.0
        %vm1108 = vcmp.ge.f32.partialorder %v1065, 0.0
        %vm1109 = vcmp.ge.f32.partialorder %v1067, 0.0
        %vm1110 = vcmp.ge.f32.partialorder %v1069, 0.0
        %vm1111 = vcmp.ge.f32.partialorder %v1073, 0.0
        %vm1112 = vcmp.ge.f32.partialorder %v1075, 0.0
        %v1113 = vlaneseq
        %v1114 = vshrl.u32 %v1113, 7
        %v1115 = vsub.s32 1, %v1114
        %v1116 = vrot.slane %v424, %v1115
        %v1117 = vlaneseq
        %v1118 = vshrl.u32 %v1117, 7
        %v1119 = vsub.s32 5, %v1118
        %v1120 = vrot.slane %v424, %v1119
        %v1123 = vlaneseq
        %v1124 = vshrl.u32 %v1123, 7
        %v1125 = vsub.s32 1, %v1124
        %v1126 = vrot.slane %v1116, %v1125
        %v1127 = vlaneseq
        %v1128 = vshrl.u32 %v1127, 7
        %v1129 = vsub.s32 1, %v1128
        %v1130 = vrot.slane %v1120, %v1129
        %v1131 = vmul.f32 %v1126, %v993
        %v1132 = vmul.f32 %v1130, %v995
        %v1133 = vmul.f32 %v1126, %v997
        %v1134 = vmul.f32 %v1130, %v999
        %v1135 = vmul.f32 %v1126, %v1003
        %v1136 = vmul.f32 %v1130, %v1005
        %v1137 = vmul.f32 %v1126, %v1007
        %v1138 = vmul.f32 %v1130, %v1009
        %v1139 = vmul.f32 %v1126, %v1013
        %v1140 = vmul.f32 %v1130, %v1015
        %v1141 = vmul.f32 %v1126, %v1017
        %v1142 = vmul.f32 %v1130, %v1019
        %v1143 = vmul.f32 %v1126, %v1023
        %v1144 = vmul.f32 %v1130, %v1025
        %v1145 = vmul.f32 %v1126, %v1027
        %v1146 = vmul.f32 %v1130, %v1029
        %v1147 = vmul.f32 %v1126, %v1033
        %v1148 = vmul.f32 %v1130, %v1035
        %v1149 = vmul.f32 %v1126, %v1037
        %v1150 = vmul.f32 %v1130, %v1039
        %v1151 = vmul.f32 %v1126, %v1043
        %v1152 = vmul.f32 %v1130, %v1045
        %v1153 = vmul.f32 %v1126, %v1047
        %v1154 = vmul.f32 %v1130, %v1049
        %v1155 = vmul.f32 %v1126, %v1053
        %v1156 = vmul.f32 %v1130, %v1055
        %v1157 = vmul.f32 %v1126, %v1057
        %v1158 = vmul.f32 %v1130, %v1059
        %v1159 = vmul.f32 %v1126, %v1063
        %v1160 = vmul.f32 %v1130, %v1065
        %v1161 = vmul.f32 %v1126, %v1067
        %v1162 = vmul.f32 %v1130, %v1069
        %v1163 = vmul.f32 %v1126, %v1073
        %v1164 = vmul.f32 %v1130, %v1075
        %v1165 = vsel %vm1079, %v993, %v1131
        %v1166 = vsel %vm1080, %v995, %v1132
        %v1167 = vsel %vm1081, %v997, %v1133
        %v1168 = vsel %vm1082, %v999, %v1134
        %v1169 = vsel %vm1083, %v1003, %v1135
        %v1170 = vsel %vm1084, %v1005, %v1136
        %v1171 = vsel %vm1085, %v1007, %v1137
        %v1172 = vsel %vm1086, %v1009, %v1138
        %v1173 = vsel %vm1087, %v1013, %v1139
        %v1174 = vsel %vm1088, %v1015, %v1140
        %v1175 = vsel %vm1089, %v1017, %v1141
        %v1176 = vsel %vm1090, %v1019, %v1142
        %v1177 = vsel %vm1091, %v1023, %v1143
        %v1178 = vsel %vm1092, %v1025, %v1144
        %v1179 = vsel %vm1093, %v1027, %v1145
        %v1180 = vsel %vm1094, %v1029, %v1146
        %v1181 = vsel %vm1095, %v1033, %v1147
        %v1182 = vsel %vm1096, %v1035, %v1148
        %v1183 = vsel %vm1097, %v1037, %v1149
        %v1184 = vsel %vm1098, %v1039, %v1150
        %v1185 = vsel %vm1099, %v1043, %v1151
        %v1186 = vsel %vm1100, %v1045, %v1152
        %v1187 = vsel %vm1101, %v1047, %v1153
        %v1188 = vsel %vm1102, %v1049, %v1154
        %v1189 = vsel %vm1103, %v1053, %v1155
        %v1190 = vsel %vm1104, %v1055, %v1156
        %v1191 = vsel %vm1105, %v1057, %v1157
        %v1192 = vsel %vm1106, %v1059, %v1158
        %v1193 = vsel %vm1107, %v1063, %v1159
        %v1194 = vsel %vm1108, %v1065, %v1160
        %v1195 = vsel %vm1109, %v1067, %v1161
        %v1196 = vsel %vm1110, %v1069, %v1162
        %v1197 = vsel %vm1111, %v1073, %v1163
        %v1198 = vsel %vm1112, %v1075, %v1164
        %v1199 = vadd.f32 %v1165, %v702
        %v1200 = vadd.f32 %v1166, %v703
        %v1201 = vadd.f32 %v1167, %v704
        %v1202 = vadd.f32 %v1168, %v705
        %v1203 = vadd.f32 %v1169, %v706
        %v1204 = vadd.f32 %v1170, %v707
        %v1205 = vadd.f32 %v1171, %v708
        %v1206 = vadd.f32 %v1172, %v709
        %v1207 = vadd.f32 %v1173, %v710
        %v1208 = vadd.f32 %v1174, %v711
        %v1209 = vadd.f32 %v1175, %v712
        %v1210 = vadd.f32 %v1176, %v713
        %v1211 = vadd.f32 %v1177, %v714
        %v1212 = vadd.f32 %v1178, %v715
        %v1213 = vadd.f32 %v1179, %v716
        %v1214 = vadd.f32 %v1180, %v717
        %v1215 = vadd.f32 %v1181, %v718
        %v1216 = vadd.f32 %v1182, %v719
        %v1217 = vadd.f32 %v1183, %v720
        %v1218 = vadd.f32 %v1184, %v721
        %v1219 = vadd.f32 %v1185, %v722
        %v1220 = vadd.f32 %v1186, %v723
        %v1221 = vadd.f32 %v1187, %v724
        %v1222 = vadd.f32 %v1188, %v725
        %v1223 = vadd.f32 %v1189, %v726
        %v1224 = vadd.f32 %v1190, %v727
        %v1225 = vadd.f32 %v1191, %v728
        %v1226 = vadd.f32 %v1192, %v729
        %v1227 = vadd.f32 %v1193, %v730
        %v1228 = vadd.f32 %v1194, %v731
        %v1229 = vadd.f32 %v1195, %v732
        %v1230 = vadd.f32 %v1196, %v733
        %v1231 = vadd.f32 %v1197, %v734
        %v1232 = vadd.f32 %v1198, %v735
        %v1233 = vpack.c.bf16 %v1201, %v1199
        %v1234 = vpack.c.bf16 %v1202, %v1200
        %v1235 = vpack.c.bf16 %v1205, %v1203
        %v1236 = vpack.c.bf16 %v1206, %v1204
        %v1237 = vpack.c.bf16 %v1209, %v1207
        %v1238 = vpack.c.bf16 %v1210, %v1208
        %v1239 = vpack.c.bf16 %v1213, %v1211
        %v1240 = vpack.c.bf16 %v1214, %v1212
        %v1241 = vpack.c.bf16 %v1217, %v1215
        %v1242 = vpack.c.bf16 %v1218, %v1216
        %v1243 = vpack.c.bf16 %v1221, %v1219
        %v1244 = vpack.c.bf16 %v1222, %v1220
        %v1245 = vpack.c.bf16 %v1225, %v1223
        %v1246 = vpack.c.bf16 %v1226, %v1224
        %v1247 = vpack.c.bf16 %v1229, %v1227
        %v1248 = vpack.c.bf16 %v1230, %v1228
        %v1249 = vpack.c.bf16 %v1231, %v1231
        %v1250 = vpack.c.bf16 %v1232, %v1232
        %v1251 = vld [vmem:[#allocation3] sm:$0xff]
        %v1252 = vld [vmem:[#allocation3 + $0x8] sm:$0xff]
        %v1253 = vld [vmem:[#allocation3 + $0x10] sm:$0xff]
        %v1254 = vld [vmem:[#allocation3 + $0x18] sm:$0xff]
        %v1255 = vld [vmem:[#allocation3 + $0x20] sm:$0xff]
        %v1256 = vld [vmem:[#allocation3 + $0x28] sm:$0xff]
        %v1257 = vld [vmem:[#allocation3 + $0x30] sm:$0xff]
        %v1258 = vld [vmem:[#allocation3 + $0x38] sm:$0xff]
        %v1259 = vld [vmem:[#allocation3 + $0x40] sm:$0xff]
        %v1260 = vld [vmem:[#allocation3 + $0x48] sm:$0xff]
        %v1261 = vld [vmem:[#allocation3 + $0x50] sm:$0xff]
        %v1262 = vld [vmem:[#allocation3 + $0x58] sm:$0xff]
        %v1263 = vld [vmem:[#allocation3 + $0x60] sm:$0xff]
        %v1264 = vld [vmem:[#allocation3 + $0x68] sm:$0xff]
        %v1265 = vld [vmem:[#allocation3 + $0x70] sm:$0xff]
        %v1266 = vld [vmem:[#allocation3 + $0x78] sm:$0xff]
        %v1267 = vld [vmem:[#allocation3 + $0x80] sm:$0xff]
        %v1268 = vld [vmem:[#allocation3 + $0x88] sm:$0xff]
        %v1269 = vld [vmem:[#allocation3 + $0x90] sm:$0xff]
        %v1270 = vld [vmem:[#allocation3 + $0x98] sm:$0xff]
        %v1271 = vld [vmem:[#allocation3 + $0xa0] sm:$0xff]
        %v1272 = vld [vmem:[#allocation3 + $0xa8] sm:$0xff]
        %v1273 = vld [vmem:[#allocation3 + $0xb0] sm:$0xff]
        %v1274 = vld [vmem:[#allocation3 + $0xb8] sm:$0xff]
        %v1275 = vld [vmem:[#allocation3 + $0xc0] sm:$0xff]
        %v1276 = vld [vmem:[#allocation3 + $0xc8] sm:$0xff]
        %v1277 = vld [vmem:[#allocation3 + $0xd0] sm:$0xff]
        %v1278 = vld [vmem:[#allocation3 + $0xd8] sm:$0xff]
        %v1279 = vld [vmem:[#allocation3 + $0xe0] sm:$0xff]
        %v1280 = vld [vmem:[#allocation3 + $0xe8] sm:$0xff]
        %v1281 = vld [vmem:[#allocation3 + $0xf0] sm:$0xff]
        %v1282 = vld [vmem:[#allocation3 + $0xf8] sm:$0xff]
        %v1283 = vld [vmem:[%s8] sm:$0x3]
        %v1285 = vlaneseq
        %v1286 = vshrl.u32 %v1285, 7
        %v1287 = vsub.s32 0, %v1286
        %v1288 = vrot.slane %v1283, %v1287
        %v1289 = vlaneseq
        %v1290 = vshrl.u32 %v1289, 7
        %v1291 = vsub.s32 1, %v1290
        %v1292 = vrot.slane %v1283, %v1291
        %v1327 = vunpack.c.l.b16 %v1251
        %v1328 = vunpack.c.h.b16 %v1251
        %v1329 = vunpack.c.l.b16 %v1252
        %v1330 = vunpack.c.h.b16 %v1252
        %v1331 = vunpack.c.l.b16 %v1253
        %v1332 = vunpack.c.h.b16 %v1253
        %v1333 = vunpack.c.l.b16 %v1254
        %v1334 = vunpack.c.h.b16 %v1254
        %v1335 = vunpack.c.l.b16 %v1255
        %v1336 = vunpack.c.h.b16 %v1255
        %v1337 = vunpack.c.l.b16 %v1256
        %v1338 = vunpack.c.h.b16 %v1256
        %v1339 = vunpack.c.l.b16 %v1257
        %v1340 = vunpack.c.h.b16 %v1257
        %v1341 = vunpack.c.l.b16 %v1258
        %v1342 = vunpack.c.h.b16 %v1258
        %v1343 = vunpack.c.l.b16 %v1259
        %v1344 = vunpack.c.h.b16 %v1259
        %v1345 = vunpack.c.l.b16 %v1260
        %v1346 = vunpack.c.h.b16 %v1260
        %v1347 = vunpack.c.l.b16 %v1261
        %v1348 = vunpack.c.h.b16 %v1261
        %v1349 = vunpack.c.l.b16 %v1262
        %v1350 = vunpack.c.h.b16 %v1262
        %v1351 = vunpack.c.l.b16 %v1263
        %v1352 = vunpack.c.h.b16 %v1263
        %v1353 = vunpack.c.l.b16 %v1264
        %v1354 = vunpack.c.h.b16 %v1264
        %v1355 = vunpack.c.l.b16 %v1265
        %v1356 = vunpack.c.h.b16 %v1265
        %v1357 = vunpack.c.l.b16 %v1266
        %v1358 = vunpack.c.h.b16 %v1266
        %v1359 = vunpack.c.l.b16 %v1267
        %v1360 = vunpack.c.h.b16 %v1267
        %v1361 = vunpack.c.l.b16 %v1268
        %v1362 = vunpack.c.h.b16 %v1268
        %v1363 = vunpack.c.l.b16 %v1269
        %v1364 = vunpack.c.h.b16 %v1269
        %v1365 = vunpack.c.l.b16 %v1270
        %v1366 = vunpack.c.h.b16 %v1270
        %v1367 = vunpack.c.l.b16 %v1271
        %v1368 = vunpack.c.h.b16 %v1271
        %v1369 = vunpack.c.l.b16 %v1272
        %v1370 = vunpack.c.h.b16 %v1272
        %v1371 = vunpack.c.l.b16 %v1273
        %v1372 = vunpack.c.h.b16 %v1273
        %v1373 = vunpack.c.l.b16 %v1274
        %v1374 = vunpack.c.h.b16 %v1274
        %v1375 = vunpack.c.l.b16 %v1275
        %v1376 = vunpack.c.h.b16 %v1275
        %v1377 = vunpack.c.l.b16 %v1276
        %v1378 = vunpack.c.h.b16 %v1276
        %v1379 = vunpack.c.l.b16 %v1277
        %v1380 = vunpack.c.h.b16 %v1277
        %v1381 = vunpack.c.l.b16 %v1278
        %v1382 = vunpack.c.h.b16 %v1278
        %v1383 = vunpack.c.l.b16 %v1279
        %v1384 = vunpack.c.h.b16 %v1279
        %v1385 = vunpack.c.l.b16 %v1280
        %v1386 = vunpack.c.h.b16 %v1280
        %v1387 = vunpack.c.l.b16 %v1281
        %v1388 = vunpack.c.h.b16 %v1281
        %v1389 = vunpack.c.l.b16 %v1282
        %v1390 = vunpack.c.h.b16 %v1282
        %v1391 = vpack.c.b16 %v1329, %v1327
        %v1392 = vpack.c.b16 %v1330, %v1328
        %v1393 = vpack.c.b16 %v1333, %v1331
        %v1394 = vpack.c.b16 %v1334, %v1332
        %v1395 = vpack.c.b16 %v1337, %v1335
        %v1396 = vpack.c.b16 %v1338, %v1336
        %v1397 = vpack.c.b16 %v1341, %v1339
        %v1398 = vpack.c.b16 %v1342, %v1340
        %v1399 = vpack.c.b16 %v1345, %v1343
        %v1400 = vpack.c.b16 %v1346, %v1344
        %v1401 = vpack.c.b16 %v1349, %v1347
        %v1402 = vpack.c.b16 %v1350, %v1348
        %v1403 = vpack.c.b16 %v1353, %v1351
        %v1404 = vpack.c.b16 %v1354, %v1352
        %v1405 = vpack.c.b16 %v1357, %v1355
        %v1406 = vpack.c.b16 %v1358, %v1356
        %v1407 = vpack.c.b16 %v1361, %v1359
        %v1408 = vpack.c.b16 %v1362, %v1360
        %v1409 = vpack.c.b16 %v1365, %v1363
        %v1410 = vpack.c.b16 %v1366, %v1364
        %v1411 = vpack.c.b16 %v1369, %v1367
        %v1412 = vpack.c.b16 %v1370, %v1368
        %v1413 = vpack.c.b16 %v1373, %v1371
        %v1414 = vpack.c.b16 %v1374, %v1372
        %v1415 = vpack.c.b16 %v1377, %v1375
        %v1416 = vpack.c.b16 %v1378, %v1376
        %v1417 = vpack.c.b16 %v1381, %v1379
        %v1418 = vpack.c.b16 %v1382, %v1380
        %v1419 = vpack.c.b16 %v1385, %v1383
        %v1420 = vpack.c.b16 %v1386, %v1384
        %v1421 = vpack.c.b16 %v1389, %v1387
        %v1422 = vpack.c.b16 %v1390, %v1388
        %1455 = vmatprep.subr.bf16.mxu0 %v1392
        %1456 = vmatpush1.bf16.msra.mxu0 %v1391
        %1457 = vmatprep.subr.bf16.mxu0 %v1394
        %1458 = vmatpush1.bf16.msra.mxu0 %v1393
        %1459 = vmatprep.subr.bf16.mxu0 %v1396
        %1460 = vmatpush1.bf16.msra.mxu0 %v1395
        %1461 = vmatprep.subr.bf16.mxu0 %v1398
        %1462 = vmatpush1.bf16.msra.mxu0 %v1397
        %1463 = vmatprep.subr.bf16.mxu0 %v1400
        %1464 = vmatpush1.bf16.msra.mxu0 %v1399
        %1465 = vmatprep.subr.bf16.mxu0 %v1402
        %1466 = vmatpush1.bf16.msra.mxu0 %v1401
        %1467 = vmatprep.subr.bf16.mxu0 %v1404
        %1468 = vmatpush1.bf16.msra.mxu0 %v1403
        %1469 = vmatprep.subr.bf16.mxu0 %v1406
        %1470 = vmatpush1.bf16.msra.mxu0 %v1405
        %1471 = vmatprep.subr.bf16.mxu0 %v1408
        %1472 = vmatpush1.bf16.msra.mxu0 %v1407
        %1473 = vmatprep.subr.bf16.mxu0 %v1410
        %1474 = vmatpush1.bf16.msra.mxu0 %v1409
        %1475 = vmatprep.subr.bf16.mxu0 %v1412
        %1476 = vmatpush1.bf16.msra.mxu0 %v1411
        %1477 = vmatprep.subr.bf16.mxu0 %v1414
        %1478 = vmatpush1.bf16.msra.mxu0 %v1413
        %1479 = vmatprep.subr.bf16.mxu0 %v1416
        %1480 = vmatpush1.bf16.msra.mxu0 %v1415
        %1481 = vmatprep.subr.bf16.mxu0 %v1418
        %1482 = vmatpush1.bf16.msra.mxu0 %v1417
        %1483 = vmatprep.subr.bf16.mxu0 %v1420
        %1484 = vmatpush1.bf16.msra.mxu0 %v1419
        %1485 = vmatprep.subr.bf16.mxu0 %v1422
        %1486 = vmatpush1.bf16.msra.mxu0 %v1421
        %1487 = vmatprep.mubr.bf16.mxu0 %v1234
        %1488 = vmatmul.mubr.bf16.gmra.mrb[0].mxu0 %v1233
        %v1489 = vpop.f32.mrb[0].mxu0
        %v1490 = vadd.f32 %v1288, %v1489
        %v1491 = vpop.f32.mrb[0].mxu0
        %v1492 = vadd.f32 %v1292, %v1491
        %v1493 = vpop.f32.mrb[0].mxu0
        %v1494 = vadd.f32 %v1288, %v1493
        %v1495 = vpop.f32.mrb[0].mxu0
        %v1496 = vadd.f32 %v1292, %v1495
        %1497 = vmatprep.mubr.bf16.mxu0 %v1236
        %1498 = vmatmul.mubr.bf16.gmra.mrb[0].mxu0 %v1235
        %v1499 = vpop.f32.mrb[0].mxu0
        %v1500 = vadd.f32 %v1288, %v1499
        %v1501 = vpop.f32.mrb[0].mxu0
        %v1502 = vadd.f32 %v1292, %v1501
        %v1503 = vpop.f32.mrb[0].mxu0
        %v1504 = vadd.f32 %v1288, %v1503
        %v1505 = vpop.f32.mrb[0].mxu0
        %v1506 = vadd.f32 %v1292, %v1505
        %1507 = vmatprep.mubr.bf16.mxu0 %v1238
        %1508 = vmatmul.mubr.bf16.gmra.mrb[0].mxu0 %v1237
        %v1509 = vpop.f32.mrb[0].mxu0
        %v1510 = vadd.f32 %v1288, %v1509
        %v1511 = vpop.f32.mrb[0].mxu0
        %v1512 = vadd.f32 %v1292, %v1511
        %v1513 = vpop.f32.mrb[0].mxu0
        %v1514 = vadd.f32 %v1288, %v1513
        %v1515 = vpop.f32.mrb[0].mxu0
        %v1516 = vadd.f32 %v1292, %v1515
        %1517 = vmatprep.mubr.bf16.mxu0 %v1240
        %1518 = vmatmul.mubr.bf16.gmra.mrb[0].mxu0 %v1239
        %v1519 = vpop.f32.mrb[0].mxu0
        %v1520 = vadd.f32 %v1288, %v1519
        %v1521 = vpop.f32.mrb[0].mxu0
        %v1522 = vadd.f32 %v1292, %v1521
        %v1523 = vpop.f32.mrb[0].mxu0
        %v1524 = vadd.f32 %v1288, %v1523
        %v1525 = vpop.f32.mrb[0].mxu0
        %v1526 = vadd.f32 %v1292, %v1525
        %1527 = vmatprep.mubr.bf16.mxu0 %v1242
        %1528 = vmatmul.mubr.bf16.gmra.mrb[0].mxu0 %v1241
        %v1529 = vpop.f32.mrb[0].mxu0
        %v1530 = vadd.f32 %v1288, %v1529
        %v1531 = vpop.f32.mrb[0].mxu0
        %v1532 = vadd.f32 %v1292, %v1531
        %v1533 = vpop.f32.mrb[0].mxu0
        %v1534 = vadd.f32 %v1288, %v1533
        %v1535 = vpop.f32.mrb[0].mxu0
        %v1536 = vadd.f32 %v1292, %v1535
        %1537 = vmatprep.mubr.bf16.mxu0 %v1244
        %1538 = vmatmul.mubr.bf16.gmra.mrb[0].mxu0 %v1243
        %v1539 = vpop.f32.mrb[0].mxu0
        %v1540 = vadd.f32 %v1288, %v1539
        %v1541 = vpop.f32.mrb[0].mxu0
        %v1542 = vadd.f32 %v1292, %v1541
        %v1543 = vpop.f32.mrb[0].mxu0
        %v1544 = vadd.f32 %v1288, %v1543
        %v1545 = vpop.f32.mrb[0].mxu0
        %v1546 = vadd.f32 %v1292, %v1545
        %1547 = vmatprep.mubr.bf16.mxu0 %v1246
        %1548 = vmatmul.mubr.bf16.gmra.mrb[0].mxu0 %v1245
        %v1549 = vpop.f32.mrb[0].mxu0
        %v1550 = vadd.f32 %v1288, %v1549
        %v1551 = vpop.f32.mrb[0].mxu0
        %v1552 = vadd.f32 %v1292, %v1551
        %v1553 = vpop.f32.mrb[0].mxu0
        %v1554 = vadd.f32 %v1288, %v1553
        %v1555 = vpop.f32.mrb[0].mxu0
        %v1556 = vadd.f32 %v1292, %v1555
        %1557 = vmatprep.mubr.bf16.mxu0 %v1248
        %1558 = vmatmul.mubr.bf16.gmra.mrb[0].mxu0 %v1247
        %v1559 = vpop.f32.mrb[0].mxu0
        %v1560 = vadd.f32 %v1288, %v1559
        %v1561 = vpop.f32.mrb[0].mxu0
        %v1562 = vadd.f32 %v1292, %v1561
        %v1563 = vpop.f32.mrb[0].mxu0
        %v1564 = vadd.f32 %v1288, %v1563
        %v1565 = vpop.f32.mrb[0].mxu0
        %v1566 = vadd.f32 %v1292, %v1565
        %1567 = vmatprep.mubr.bf16.mxu0 %v1250
        %1568 = vmatmul.mubr.bf16.gmra.mrb[0].mxu0 %v1249
        %v1569 = vpop.f32.mrb[0].mxu0
        %v1570 = vadd.f32 %v1288, %v1569
        %v1571 = vpop.f32.mrb[0].mxu0
        %v1572 = vadd.f32 %v1292, %v1571
        %v1573 = vpop.f32.mrb[0].mxu0
        %v1574 = vpop.f32.mrb[0].mxu0
        %1575 = vdwg.mxu0
        %vm1576 = vcmp.ge.f32.partialorder %v1490, 0.0
        %vm1577 = vcmp.ge.f32.partialorder %v1492, 0.0
        %vm1578 = vcmp.ge.f32.partialorder %v1494, 0.0
        %vm1579 = vcmp.ge.f32.partialorder %v1496, 0.0
        %vm1580 = vcmp.ge.f32.partialorder %v1500, 0.0
        %vm1581 = vcmp.ge.f32.partialorder %v1502, 0.0
        %vm1582 = vcmp.ge.f32.partialorder %v1504, 0.0
        %vm1583 = vcmp.ge.f32.partialorder %v1506, 0.0
        %vm1584 = vcmp.ge.f32.partialorder %v1510, 0.0
        %vm1585 = vcmp.ge.f32.partialorder %v1512, 0.0
        %vm1586 = vcmp.ge.f32.partialorder %v1514, 0.0
        %vm1587 = vcmp.ge.f32.partialorder %v1516, 0.0
        %vm1588 = vcmp.ge.f32.partialorder %v1520, 0.0
        %vm1589 = vcmp.ge.f32.partialorder %v1522, 0.0
        %vm1590 = vcmp.ge.f32.partialorder %v1524, 0.0
        %vm1591 = vcmp.ge.f32.partialorder %v1526, 0.0
        %vm1592 = vcmp.ge.f32.partialorder %v1530, 0.0
        %vm1593 = vcmp.ge.f32.partialorder %v1532, 0.0
        %vm1594 = vcmp.ge.f32.partialorder %v1534, 0.0
        %vm1595 = vcmp.ge.f32.partialorder %v1536, 0.0
        %vm1596 = vcmp.ge.f32.partialorder %v1540, 0.0
        %vm1597 = vcmp.ge.f32.partialorder %v1542, 0.0
        %vm1598 = vcmp.ge.f32.partialorder %v1544, 0.0
        %vm1599 = vcmp.ge.f32.partialorder %v1546, 0.0
        %vm1600 = vcmp.ge.f32.partialorder %v1550, 0.0
        %vm1601 = vcmp.ge.f32.partialorder %v1552, 0.0
        %vm1602 = vcmp.ge.f32.partialorder %v1554, 0.0
        %vm1603 = vcmp.ge.f32.partialorder %v1556, 0.0
        %vm1604 = vcmp.ge.f32.partialorder %v1560, 0.0
        %vm1605 = vcmp.ge.f32.partialorder %v1562, 0.0
        %vm1606 = vcmp.ge.f32.partialorder %v1564, 0.0
        %vm1607 = vcmp.ge.f32.partialorder %v1566, 0.0
        %vm1608 = vcmp.ge.f32.partialorder %v1570, 0.0
        %vm1609 = vcmp.ge.f32.partialorder %v1572, 0.0
        %v1610 = vlaneseq
        %v1611 = vshrl.u32 %v1610, 7
        %v1612 = vsub.s32 2, %v1611
        %v1613 = vrot.slane %v424, %v1612
        %v1614 = vlaneseq
        %v1615 = vshrl.u32 %v1614, 7
        %v1616 = vsub.s32 6, %v1615
        %v1617 = vrot.slane %v424, %v1616
        %v1620 = vlaneseq
        %v1621 = vshrl.u32 %v1620, 7
        %v1622 = vsub.s32 2, %v1621
        %v1623 = vrot.slane %v1613, %v1622
        %v1624 = vlaneseq
        %v1625 = vshrl.u32 %v1624, 7
        %v1626 = vsub.s32 2, %v1625
        %v1627 = vrot.slane %v1617, %v1626
        %v1628 = vmul.f32 %v1623, %v1490
        %v1629 = vmul.f32 %v1627, %v1492
        %v1630 = vmul.f32 %v1623, %v1494
        %v1631 = vmul.f32 %v1627, %v1496
        %v1632 = vmul.f32 %v1623, %v1500
        %v1633 = vmul.f32 %v1627, %v1502
        %v1634 = vmul.f32 %v1623, %v1504
        %v1635 = vmul.f32 %v1627, %v1506
        %v1636 = vmul.f32 %v1623, %v1510
        %v1637 = vmul.f32 %v1627, %v1512
        %v1638 = vmul.f32 %v1623, %v1514
        %v1639 = vmul.f32 %v1627, %v1516
        %v1640 = vmul.f32 %v1623, %v1520
        %v1641 = vmul.f32 %v1627, %v1522
        %v1642 = vmul.f32 %v1623, %v1524
        %v1643 = vmul.f32 %v1627, %v1526
        %v1644 = vmul.f32 %v1623, %v1530
        %v1645 = vmul.f32 %v1627, %v1532
        %v1646 = vmul.f32 %v1623, %v1534
        %v1647 = vmul.f32 %v1627, %v1536
        %v1648 = vmul.f32 %v1623, %v1540
        %v1649 = vmul.f32 %v1627, %v1542
        %v1650 = vmul.f32 %v1623, %v1544
        %v1651 = vmul.f32 %v1627, %v1546
        %v1652 = vmul.f32 %v1623, %v1550
        %v1653 = vmul.f32 %v1627, %v1552
        %v1654 = vmul.f32 %v1623, %v1554
        %v1655 = vmul.f32 %v1627, %v1556
        %v1656 = vmul.f32 %v1623, %v1560
        %v1657 = vmul.f32 %v1627, %v1562
        %v1658 = vmul.f32 %v1623, %v1564
        %v1659 = vmul.f32 %v1627, %v1566
        %v1660 = vmul.f32 %v1623, %v1570
        %v1661 = vmul.f32 %v1627, %v1572
        %v1662 = vsel %vm1576, %v1490, %v1628
        %v1663 = vsel %vm1577, %v1492, %v1629
        %v1664 = vsel %vm1578, %v1494, %v1630
        %v1665 = vsel %vm1579, %v1496, %v1631
        %v1666 = vsel %vm1580, %v1500, %v1632
        %v1667 = vsel %vm1581, %v1502, %v1633
        %v1668 = vsel %vm1582, %v1504, %v1634
        %v1669 = vsel %vm1583, %v1506, %v1635
        %v1670 = vsel %vm1584, %v1510, %v1636
        %v1671 = vsel %vm1585, %v1512, %v1637
        %v1672 = vsel %vm1586, %v1514, %v1638
        %v1673 = vsel %vm1587, %v1516, %v1639
        %v1674 = vsel %vm1588, %v1520, %v1640
        %v1675 = vsel %vm1589, %v1522, %v1641
        %v1676 = vsel %vm1590, %v1524, %v1642
        %v1677 = vsel %vm1591, %v1526, %v1643
        %v1678 = vsel %vm1592, %v1530, %v1644
        %v1679 = vsel %vm1593, %v1532, %v1645
        %v1680 = vsel %vm1594, %v1534, %v1646
        %v1681 = vsel %vm1595, %v1536, %v1647
        %v1682 = vsel %vm1596, %v1540, %v1648
        %v1683 = vsel %vm1597, %v1542, %v1649
        %v1684 = vsel %vm1598, %v1544, %v1650
        %v1685 = vsel %vm1599, %v1546, %v1651
        %v1686 = vsel %vm1600, %v1550, %v1652
        %v1687 = vsel %vm1601, %v1552, %v1653
        %v1688 = vsel %vm1602, %v1554, %v1654
        %v1689 = vsel %vm1603, %v1556, %v1655
        %v1690 = vsel %vm1604, %v1560, %v1656
        %v1691 = vsel %vm1605, %v1562, %v1657
        %v1692 = vsel %vm1606, %v1564, %v1658
        %v1693 = vsel %vm1607, %v1566, %v1659
        %v1694 = vsel %vm1608, %v1570, %v1660
        %v1695 = vsel %vm1609, %v1572, %v1661
        %v1696 = vadd.f32 %v1662, %v1199
        %v1697 = vadd.f32 %v1663, %v1200
        %v1698 = vadd.f32 %v1664, %v1201
        %v1699 = vadd.f32 %v1665, %v1202
        %v1700 = vadd.f32 %v1666, %v1203
        %v1701 = vadd.f32 %v1667, %v1204
        %v1702 = vadd.f32 %v1668, %v1205
        %v1703 = vadd.f32 %v1669, %v1206
        %v1704 = vadd.f32 %v1670, %v1207
        %v1705 = vadd.f32 %v1671, %v1208
        %v1706 = vadd.f32 %v1672, %v1209
        %v1707 = vadd.f32 %v1673, %v1210
        %v1708 = vadd.f32 %v1674, %v1211
        %v1709 = vadd.f32 %v1675, %v1212
        %v1710 = vadd.f32 %v1676, %v1213
        %v1711 = vadd.f32 %v1677, %v1214
        %v1712 = vadd.f32 %v1678, %v1215
        %v1713 = vadd.f32 %v1679, %v1216
        %v1714 = vadd.f32 %v1680, %v1217
        %v1715 = vadd.f32 %v1681, %v1218
        %v1716 = vadd.f32 %v1682, %v1219
        %v1717 = vadd.f32 %v1683, %v1220
        %v1718 = vadd.f32 %v1684, %v1221
        %v1719 = vadd.f32 %v1685, %v1222
        %v1720 = vadd.f32 %v1686, %v1223
        %v1721 = vadd.f32 %v1687, %v1224
        %v1722 = vadd.f32 %v1688, %v1225
        %v1723 = vadd.f32 %v1689, %v1226
        %v1724 = vadd.f32 %v1690, %v1227
        %v1725 = vadd.f32 %v1691, %v1228
        %v1726 = vadd.f32 %v1692, %v1229
        %v1727 = vadd.f32 %v1693, %v1230
        %v1728 = vadd.f32 %v1694, %v1231
        %v1729 = vadd.f32 %v1695, %v1232
        %v1730 = vpack.c.bf16 %v1698, %v1696
        %v1731 = vpack.c.bf16 %v1699, %v1697
        %v1732 = vpack.c.bf16 %v1702, %v1700
        %v1733 = vpack.c.bf16 %v1703, %v1701
        %v1734 = vpack.c.bf16 %v1706, %v1704
        %v1735 = vpack.c.bf16 %v1707, %v1705
        %v1736 = vpack.c.bf16 %v1710, %v1708
        %v1737 = vpack.c.bf16 %v1711, %v1709
        %v1738 = vpack.c.bf16 %v1714, %v1712
        %v1739 = vpack.c.bf16 %v1715, %v1713
        %v1740 = vpack.c.bf16 %v1718, %v1716
        %v1741 = vpack.c.bf16 %v1719, %v1717
        %v1742 = vpack.c.bf16 %v1722, %v1720
        %v1743 = vpack.c.bf16 %v1723, %v1721
        %v1744 = vpack.c.bf16 %v1726, %v1724
        %v1745 = vpack.c.bf16 %v1727, %v1725
        %v1746 = vpack.c.bf16 %v1728, %v1728
        %v1747 = vpack.c.bf16 %v1729, %v1729
        %v1748 = vld [vmem:[%s9] sm:$0xf]
        %v1749 = vld [vmem:[%s9 + $0x4] sm:$0xf]
        %v1750 = vld [vmem:[%s9 + $0x8] sm:$0xf]
        %v1751 = vld [vmem:[%s9 + $0xc] sm:$0xf]
        %v1752 = vld [vmem:[%s9 + $0x10] sm:$0xf]
        %v1753 = vld [vmem:[%s9 + $0x14] sm:$0xf]
        %v1754 = vld [vmem:[%s9 + $0x18] sm:$0xf]
        %v1755 = vld [vmem:[%s9 + $0x1c] sm:$0xf]
        %v1756 = vld [vmem:[%s9 + $0x20] sm:$0xf]
        %v1757 = vld [vmem:[%s9 + $0x24] sm:$0xf]
        %v1758 = vld [vmem:[%s9 + $0x28] sm:$0xf]
        %v1759 = vld [vmem:[%s9 + $0x2c] sm:$0xf]
        %v1760 = vld [vmem:[%s9 + $0x30] sm:$0xf]
        %v1761 = vld [vmem:[%s9 + $0x34] sm:$0xf]
        %v1762 = vld [vmem:[%s9 + $0x38] sm:$0xf]
        %v1763 = vld [vmem:[%s9 + $0x3c] sm:$0xf]
        %v1764 = vld [vmem:[%s9 + $0x40] sm:$0xf]
        %v1765 = vld [vmem:[%s9 + $0x44] sm:$0xf]
        %v1766 = vld [vmem:[%s9 + $0x48] sm:$0xf]
        %v1767 = vld [vmem:[%s9 + $0x4c] sm:$0xf]
        %v1768 = vld [vmem:[%s9 + $0x50] sm:$0xf]
        %v1769 = vld [vmem:[%s9 + $0x54] sm:$0xf]
        %v1770 = vld [vmem:[%s9 + $0x58] sm:$0xf]
        %v1771 = vld [vmem:[%s9 + $0x5c] sm:$0xf]
        %v1772 = vld [vmem:[%s9 + $0x60] sm:$0xf]
        %v1773 = vld [vmem:[%s9 + $0x64] sm:$0xf]
        %v1774 = vld [vmem:[%s9 + $0x68] sm:$0xf]
        %v1775 = vld [vmem:[%s9 + $0x6c] sm:$0xf]
        %v1776 = vld [vmem:[%s9 + $0x70] sm:$0xf]
        %v1777 = vld [vmem:[%s9 + $0x74] sm:$0xf]
        %v1778 = vld [vmem:[%s9 + $0x78] sm:$0xf]
        %v1779 = vld [vmem:[%s9 + $0x7c] sm:$0xf]
        %v1780 = vld [vmem:[%s10] sm:$0x1]
        %v1782 = vlaneseq
        %v1783 = vshrl.u32 %v1782, 7
        %v1784 = vsub.s32 0, %v1783
        %v1785 = vrot.slane %v1780, %v1784
        %v1819 = vunpack.c.l.b16 %v1748
        %v1820 = vunpack.c.l.b16 %v1749
        %v1821 = vunpack.c.l.b16 %v1750
        %v1822 = vunpack.c.l.b16 %v1751
        %v1823 = vunpack.c.l.b16 %v1752
        %v1824 = vunpack.c.l.b16 %v1753
        %v1825 = vunpack.c.l.b16 %v1754
        %v1826 = vunpack.c.l.b16 %v1755
        %v1827 = vunpack.c.l.b16 %v1756
        %v1828 = vunpack.c.l.b16 %v1757
        %v1829 = vunpack.c.l.b16 %v1758
        %v1830 = vunpack.c.l.b16 %v1759
        %v1831 = vunpack.c.l.b16 %v1760
        %v1832 = vunpack.c.l.b16 %v1761
        %v1833 = vunpack.c.l.b16 %v1762
        %v1834 = vunpack.c.l.b16 %v1763
        %v1835 = vunpack.c.l.b16 %v1764
        %v1836 = vunpack.c.l.b16 %v1765
        %v1837 = vunpack.c.l.b16 %v1766
        %v1838 = vunpack.c.l.b16 %v1767
        %v1839 = vunpack.c.l.b16 %v1768
        %v1840 = vunpack.c.l.b16 %v1769
        %v1841 = vunpack.c.l.b16 %v1770
        %v1842 = vunpack.c.l.b16 %v1771
        %v1843 = vunpack.c.l.b16 %v1772
        %v1844 = vunpack.c.l.b16 %v1773
        %v1845 = vunpack.c.l.b16 %v1774
        %v1846 = vunpack.c.l.b16 %v1775
        %v1847 = vunpack.c.l.b16 %v1776
        %v1848 = vunpack.c.l.b16 %v1777
        %v1849 = vunpack.c.l.b16 %v1778
        %v1850 = vunpack.c.l.b16 %v1779
        %v1851 = vpack.c.b16 %v1820, %v1819
        %v1852 = vpack.c.b16 %v1822, %v1821
        %v1853 = vpack.c.b16 %v1824, %v1823
        %v1854 = vpack.c.b16 %v1826, %v1825
        %v1855 = vpack.c.b16 %v1828, %v1827
        %v1856 = vpack.c.b16 %v1830, %v1829
        %v1857 = vpack.c.b16 %v1832, %v1831
        %v1858 = vpack.c.b16 %v1834, %v1833
        %v1859 = vpack.c.b16 %v1836, %v1835
        %v1860 = vpack.c.b16 %v1838, %v1837
        %v1861 = vpack.c.b16 %v1840, %v1839
        %v1862 = vpack.c.b16 %v1842, %v1841
        %v1863 = vpack.c.b16 %v1844, %v1843
        %v1864 = vpack.c.b16 %v1846, %v1845
        %v1865 = vpack.c.b16 %v1848, %v1847
        %v1866 = vpack.c.b16 %v1850, %v1849
        %1883 = vmatprep.subr.bf16.mxu0 0
        %1884 = vmatpush1.bf16.msra.mxu0 %v1851
        %1885 = vmatprep.subr.bf16.mxu0 0
        %1886 = vmatpush1.bf16.msra.mxu0 %v1852
        %1887 = vmatprep.subr.bf16.mxu0 0
        %1888 = vmatpush1.bf16.msra.mxu0 %v1853
        %1889 = vmatprep.subr.bf16.mxu0 0
        %1890 = vmatpush1.bf16.msra.mxu0 %v1854
        %1891 = vmatprep.subr.bf16.mxu0 0
        %1892 = vmatpush1.bf16.msra.mxu0 %v1855
        %1893 = vmatprep.subr.bf16.mxu0 0
        %1894 = vmatpush1.bf16.msra.mxu0 %v1856
        %1895 = vmatprep.subr.bf16.mxu0 0
        %1896 = vmatpush1.bf16.msra.mxu0 %v1857
        %1897 = vmatprep.subr.bf16.mxu0 0
        %1898 = vmatpush1.bf16.msra.mxu0 %v1858
        %1899 = vmatprep.subr.bf16.mxu0 0
        %1900 = vmatpush1.bf16.msra.mxu0 %v1859
        %1901 = vmatprep.subr.bf16.mxu0 0
        %1902 = vmatpush1.bf16.msra.mxu0 %v1860
        %1903 = vmatprep.subr.bf16.mxu0 0
        %1904 = vmatpush1.bf16.msra.mxu0 %v1861
        %1905 = vmatprep.subr.bf16.mxu0 0
        %1906 = vmatpush1.bf16.msra.mxu0 %v1862
        %1907 = vmatprep.subr.bf16.mxu0 0
        %1908 = vmatpush1.bf16.msra.mxu0 %v1863
        %1909 = vmatprep.subr.bf16.mxu0 0
        %1910 = vmatpush1.bf16.msra.mxu0 %v1864
        %1911 = vmatprep.subr.bf16.mxu0 0
        %1912 = vmatpush1.bf16.msra.mxu0 %v1865
        %1913 = vmatprep.subr.bf16.mxu0 0
        %1914 = vmatpush1.bf16.msra.mxu0 %v1866
        %1915 = vmatprep.mubr.bf16.mxu0 %v1731
        %1916 = vmatmul.mubr.bf16.gmra.mrb[0].mxu0 %v1730
        %v1917 = vpop.f32.mrb[0].mxu0
        %v1918 = vadd.f32 %v1785, %v1917
        %v1919 = vpop.f32.mrb[0].mxu0
        %v1920 = vpop.f32.mrb[0].mxu0
        %v1921 = vadd.f32 %v1785, %v1920
        %v1922 = vpop.f32.mrb[0].mxu0
        %1923 = vmatprep.mubr.bf16.mxu0 %v1733
        %1924 = vmatmul.mubr.bf16.gmra.mrb[0].mxu0 %v1732
        %v1925 = vpop.f32.mrb[0].mxu0
        %v1926 = vadd.f32 %v1785, %v1925
        %v1927 = vpop.f32.mrb[0].mxu0
        %v1928 = vpop.f32.mrb[0].mxu0
        %v1929 = vadd.f32 %v1785, %v1928
        %v1930 = vpop.f32.mrb[0].mxu0
        %1931 = vmatprep.mubr.bf16.mxu0 %v1735
        %1932 = vmatmul.mubr.bf16.gmra.mrb[0].mxu0 %v1734
        %v1933 = vpop.f32.mrb[0].mxu0
        %v1934 = vadd.f32 %v1785, %v1933
        %v1935 = vpop.f32.mrb[0].mxu0
        %v1936 = vpop.f32.mrb[0].mxu0
        %v1937 = vadd.f32 %v1785, %v1936
        %v1938 = vpop.f32.mrb[0].mxu0
        %1939 = vmatprep.mubr.bf16.mxu0 %v1737
        %1940 = vmatmul.mubr.bf16.gmra.mrb[0].mxu0 %v1736
        %v1941 = vpop.f32.mrb[0].mxu0
        %v1942 = vadd.f32 %v1785, %v1941
        %v1943 = vpop.f32.mrb[0].mxu0
        %v1944 = vpop.f32.mrb[0].mxu0
        %v1945 = vadd.f32 %v1785, %v1944
        %v1946 = vpop.f32.mrb[0].mxu0
        %1947 = vmatprep.mubr.bf16.mxu0 %v1739
        %1948 = vmatmul.mubr.bf16.gmra.mrb[0].mxu0 %v1738
        %v1949 = vpop.f32.mrb[0].mxu0
        %v1950 = vadd.f32 %v1785, %v1949
        %v1951 = vpop.f32.mrb[0].mxu0
        %v1952 = vpop.f32.mrb[0].mxu0
        %v1953 = vadd.f32 %v1785, %v1952
        %v1954 = vpop.f32.mrb[0].mxu0
        %1955 = vmatprep.mubr.bf16.mxu0 %v1741
        %1956 = vmatmul.mubr.bf16.gmra.mrb[0].mxu0 %v1740
        %v1957 = vpop.f32.mrb[0].mxu0
        %v1958 = vadd.f32 %v1785, %v1957
        %v1959 = vpop.f32.mrb[0].mxu0
        %v1960 = vpop.f32.mrb[0].mxu0
        %v1961 = vadd.f32 %v1785, %v1960
        %v1962 = vpop.f32.mrb[0].mxu0
        %1963 = vmatprep.mubr.bf16.mxu0 %v1743
        %1964 = vmatmul.mubr.bf16.gmra.mrb[0].mxu0 %v1742
        %v1965 = vpop.f32.mrb[0].mxu0
        %v1966 = vadd.f32 %v1785, %v1965
        %v1967 = vpop.f32.mrb[0].mxu0
        %v1968 = vpop.f32.mrb[0].mxu0
        %v1969 = vadd.f32 %v1785, %v1968
        %v1970 = vpop.f32.mrb[0].mxu0
        %1971 = vmatprep.mubr.bf16.mxu0 %v1745
        %1972 = vmatmul.mubr.bf16.gmra.mrb[0].mxu0 %v1744
        %v1973 = vpop.f32.mrb[0].mxu0
        %v1974 = vadd.f32 %v1785, %v1973
        %v1975 = vpop.f32.mrb[0].mxu0
        %v1976 = vpop.f32.mrb[0].mxu0
        %v1977 = vadd.f32 %v1785, %v1976
        %v1978 = vpop.f32.mrb[0].mxu0
        %1979 = vmatprep.mubr.bf16.mxu0 %v1747
        %1980 = vmatmul.mubr.bf16.gmra.mrb[0].mxu0 %v1746
        %v1981 = vpop.f32.mrb[0].mxu0
        %v1982 = vadd.f32 %v1785, %v1981
        %v1983 = vpop.f32.mrb[0].mxu0
        %v1984 = vpop.f32.mrb[0].mxu0
        %v1985 = vpop.f32.mrb[0].mxu0
        %1986 = vdwg.mxu0
        %s1987 = sld [smem:[#allocation2]]
        %v1988 = vadd.f32 %v407, %v1918
        %v1989 = vadd.f32 %v408, %v1921
        %v1990 = vadd.f32 %v409, %v1926
        %v1991 = vadd.f32 %v410, %v1929
        %v1992 = vadd.f32 %v411, %v1934
        %v1993 = vadd.f32 %v412, %v1937
        %v1994 = vadd.f32 %v413, %v1942
        %v1995 = vadd.f32 %v414, %v1945
        %v1996 = vadd.f32 %v415, %v1950
        %v1997 = vadd.f32 %v416, %v1953
        %v1998 = vadd.f32 %v417, %v1958
        %v1999 = vadd.f32 %v418, %v1961
        %v2000 = vadd.f32 %v419, %v1966
        %v2001 = vadd.f32 %v420, %v1969
        %v2002 = vadd.f32 %v421, %v1974
        %v2003 = vadd.f32 %v422, %v1977
        %v2004 = vadd.f32 %v423, %v1982
        %v2005 = vstv %s1987
        %v2006 = vmul.f32 %v2005, %v1988
        %v2007 = vmul.f32 %v2005, %v1989
        %v2008 = vmul.f32 %v2005, %v1990
        %v2009 = vmul.f32 %v2005, %v1991
        %v2010 = vmul.f32 %v2005, %v1992
        %v2011 = vmul.f32 %v2005, %v1993
        %v2012 = vmul.f32 %v2005, %v1994
        %v2013 = vmul.f32 %v2005, %v1995
        %v2014 = vmul.f32 %v2005, %v1996
        %v2015 = vmul.f32 %v2005, %v1997
        %v2016 = vmul.f32 %v2005, %v1998
        %v2017 = vmul.f32 %v2005, %v1999
        %v2018 = vmul.f32 %v2005, %v2000
        %v2019 = vmul.f32 %v2005, %v2001
        %v2020 = vmul.f32 %v2005, %v2002
        %v2021 = vmul.f32 %v2005, %v2003
        %v2022 = vmul.f32 %v2005, %v2004
        %v2023 = vmax.f32 %v2006, 0.0
        %v2024 = vmax.f32 %v2007, 0.0
        %v2025 = vmax.f32 %v2008, 0.0
        %v2026 = vmax.f32 %v2009, 0.0
        %v2027 = vmax.f32 %v2010, 0.0
        %v2028 = vmax.f32 %v2011, 0.0
        %v2029 = vmax.f32 %v2012, 0.0
        %v2030 = vmax.f32 %v2013, 0.0
        %v2031 = vmax.f32 %v2014, 0.0
        %v2032 = vmax.f32 %v2015, 0.0
        %v2033 = vmax.f32 %v2016, 0.0
        %v2034 = vmax.f32 %v2017, 0.0
        %v2035 = vmax.f32 %v2018, 0.0
        %v2036 = vmax.f32 %v2019, 0.0
        %v2037 = vmax.f32 %v2020, 0.0
        %v2038 = vmax.f32 %v2021, 0.0
        %v2039 = vmax.f32 %v2022, 0.0
        %vm2040 = vcmask 15360
        %2041 = vst.msk [vmem:[%s404] sm:$0xff] %vm2040, %v2023
        %2042 = vst.msk [vmem:[%s404 + $0x8] sm:$0xff] %vm2040, %v2024
        %2043 = vst.msk [vmem:[%s404 + $0x10] sm:$0xff] %vm2040, %v2025
        %2044 = vst.msk [vmem:[%s404 + $0x18] sm:$0xff] %vm2040, %v2026
        %2045 = vst.msk [vmem:[%s404 + $0x20] sm:$0xff] %vm2040, %v2027
        %2046 = vst.msk [vmem:[%s404 + $0x28] sm:$0xff] %vm2040, %v2028
        %2047 = vst.msk [vmem:[%s404 + $0x30] sm:$0xff] %vm2040, %v2029
        %2048 = vst.msk [vmem:[%s404 + $0x38] sm:$0xff] %vm2040, %v2030
        %2049 = vst.msk [vmem:[%s404 + $0x40] sm:$0xff] %vm2040, %v2031
        %2050 = vst.msk [vmem:[%s404 + $0x48] sm:$0xff] %vm2040, %v2032
        %2051 = vst.msk [vmem:[%s404 + $0x50] sm:$0xff] %vm2040, %v2033
        %2052 = vst.msk [vmem:[%s404 + $0x58] sm:$0xff] %vm2040, %v2034
        %2053 = vst.msk [vmem:[%s404 + $0x60] sm:$0xff] %vm2040, %v2035
        %2054 = vst.msk [vmem:[%s404 + $0x68] sm:$0xff] %vm2040, %v2036
        %2055 = vst.msk [vmem:[%s404 + $0x70] sm:$0xff] %vm2040, %v2037
        %2056 = vst.msk [vmem:[%s404 + $0x78] sm:$0xff] %vm2040, %v2038
        %2057 = vst.msk [vmem:[%s404 + $0x80] sm:$0xff] %vm2040, %v2039
        %s2058 = smul.u32 17, %s24
        %p2059 = scmp.lt.s32.totalorder %s2058, 33
        %s2060 = scalar_select %p2059, %s2058, 33
        %s2061 = smul.addr %s2060, 8
        %s2062 = scalar_lea.vmem %s11, %s2061
        // Predicated region
        $region69: #{tpu_custom_call.1} parent=63 // pred_check
          %p2063 = pneg %p278
        $region70: #{tpu_custom_call.1} parent=63 // pred_check_branch
          %2065 = sbr.rel (%p2063) target = $region72
        $region71: #{tpu_custom_call.1} parent=63 // pred_region
          %s2066 = smul.u32 17, %s24
        $region72: #{tpu_custom_call.1} parent=63 // pred_fallthru
          _
      $region64: #{tpu_custom_call.1} parent=5 // pred_fallthru
        _
      %p2067 = scmp.le.s32.totalorder 2, %s19
      // Predicated region
      $region73: #{tpu_custom_call.1} parent=5 // pred_check
        %p2068 = pneg %p2067
      $region74: #{tpu_custom_call.1} parent=5 // pred_check_branch
        %2070 = sbr.rel (%p2068) target = $region76
      $region75: #{tpu_custom_call.1} parent=5 // pred_region
        %s2071 = ssub.s32 %s19, 2
        // Predicated region
        $region77: #{tpu_custom_call.1} parent=75 // pred_check
          %p2072 = pneg %p284
        $region78: #{tpu_custom_call.1} parent=75 // pred_check_branch
          %2074 = sbr.rel (%p2072) target = $region80
        $region79: #{tpu_custom_call.1} parent=75 // pred_region
          %s2075 = smul.u32 17, %s25
          %p2076 = scmp.lt.s32.totalorder %s2075, 33
          %s2077 = scalar_select %p2076, %s2075, 33
          %s2078 = smul.addr %s2077, 8
          %s2079 = scalar_lea.vmem %s11, %s2078
        $region80: #{tpu_custom_call.1} parent=75 // pred_fallthru
          _
      $region76: #{tpu_custom_call.1} parent=5 // pred_fallthru
        _
    $region6: #{tpu_custom_call.1} parent=1 // loop_footer
      %s23 = sadd.s32 1, %s19
    $region7: #{tpu_custom_call.1} parent=1 // loop_footer_branch
      %18 = sbr.rel target = $region3
    $region8: #{tpu_custom_call.1} parent=1 // loop_exit
      _
    %2080 = vsyncpa [#allocation4], 1
    %s2081 = scalar_lea.sflag [#allocation4], 1
    %2082 = vsyncpa %s2081, 1

</llo_original>
